<compile_context>
chip_gen: v6e
topology: v6e:2x2x1
jax: 0.10.0
libtpu: 0.0.40
codegen_flags: <defaults>
</compile_context>

<pallas_src>
import jax
import jax.numpy as jnp
from jax.experimental import pallas as pl
from jax.experimental.pallas import tpu as pltpu  # noqa: F401  (TPU backend)


def _wavefront_lstm_fc_kernel(seq_ref, w_ih0_ref, rec_w_ref, b_ref,
                              fc_w_ref, fc_b_ref, out_ref):
    """Whole model in one gridless pallas_call.

    Refs (all full-array VMEM):
      seq_ref:   (T*B, Din)      time-major input slab (wrapper transposed)
      w_ih0_ref: (Din, 4H)       layer-0 input weights, gate cols [i, f, o, g]
      rec_w_ref: (L*H, L*4H)     block wavefront weight (W_hh_l diag, W_ih_l
                                 super-diagonal), gate cols [i, f, o, g]
      b_ref:     (L, 4H)         per-layer fused bias (b_ih + b_hh), reordered
      fc_w_ref:  (H, 1), fc_b_ref: (1, 1)
      out_ref:   (B, 1)
    """
    B = out_ref.shape[0]
    H = fc_w_ref.shape[0]
    L = b_ref.shape[0]
    T = seq_ref.shape[0] // B

    # Loop-invariant loads / casts (hoisted: issued once, before the recurrence).
    rec_w = rec_w_ref[...].astype(jnp.bfloat16)          # (L*H, L*4H)
    b = b_ref[...]                                        # (L, 4H) f32

    # Hoisted layer-0 input projection + bias for ALL timesteps: one MXU op,
    # bf16 operands, f32 accumulate.
    gx0 = jnp.dot(seq_ref[...].astype(jnp.bfloat16),
                  w_ih0_ref[...].astype(jnp.bfloat16),
                  preferred_element_type=jnp.float32) + b[0:1, :]   # (T*B, 4H)

    def cell(gates, c):
        # gate columns are [i, f, o, g]: one contiguous sigmoid block (B, 3H)
        # and one tanh block (B, H).  (Sub-128-lane gate slices below cost a
        # few vrot/vsel on the VPU; off the MXU-latency critical path.)
        sig = jax.nn.sigmoid(gates[:, :3 * H])
        g = jnp.tanh(gates[:, 3 * H:])
        i_g = sig[:, :H]
        f_g = sig[:, H:2 * H]
        o_g = sig[:, 2 * H:3 * H]
        c_new = f_g * c + i_g * g
        h_new = o_g * jnp.tanh(c_new)
        return h_new, c_new

    h = [jnp.zeros((B, H), jnp.float32) for _ in range(L)]
    c = [jnp.zeros((B, H), jnp.float32) for _ in range(L)]

    # Wavefront recurrence: T + L - 1 serial fused matmuls total.
    for s in range(T + L - 1):
        lhs = h[0] if L == 1 else jnp.concatenate(h, axis=-1)       # (B, L*H)
        rec = jnp.dot(lhs.astype(jnp.bfloat16), rec_w,
                      preferred_element_type=jnp.float32)           # (B, L*4H)
        h_new, c_new = list(h), list(c)
        for l in range(L):                  # updates are mutually independent
            t = s - l
            if 0 <= t < T:
                base = gx0[t * B:(t + 1) * B, :] if l == 0 else b[l:l + 1, :]
                gates = base + rec[:, l * 4 * H:(l + 1) * 4 * H]    # (B, 4H)
                h_new[l], c_new[l] = cell(gates, c[l])
        h, c = h_new, c_new

    # h[L-1] == lstm_out[:, -1, :]; only the (B, 1) FC result leaves VMEM.
    # Tiny single matmul off the critical path -> pin full f32 precision.
    out_ref[...] = (
        jnp.dot(h[L - 1], fc_w_ref[...],
                precision=jax.lax.Precision.HIGHEST,
                preferred_element_type=jnp.float32)
        + fc_b_ref[...]
    )


@jax.jit
def torch_lstm_forward(x, params):
    """x: (B, T, input_size) batch_first -> (B, 1). One fused pallas_call."""
    B, T, Din = x.shape
    # batch-major -> time-major OUTSIDE the kernel: XLA folds this into the
    # HBM layout, removing the in-kernel gather/concat prologue.
    seq = jnp.transpose(x, (1, 0, 2)).reshape(T * B, Din)
    return pl.pallas_call(
        _wavefront_lstm_fc_kernel,
        out_shape=jax.ShapeDtypeStruct((B, 1), jnp.float32),
    )(seq, params["w_ih0"], params["rec_w"], params["b"],
      params["fc_w_t"], params["fc_b"])


def _reorder_gates(a):
    """PyTorch gate order along 4H is [i, f, g, o]; reorder to [i, f, o, g]."""
    i, f, g, o = jnp.split(a, 4, axis=-1)
    return jnp.concatenate([i, f, o, g], axis=-1)


def init_params(key, input_size, hidden_size, num_layers):
    """Deterministic synthetic init matching nn.LSTM / nn.Linear shapes,
    pre-packed for the wavefront kernel (weights kept f32; bf16 cast is done
    once inside the kernel)."""
    H, L = hidden_size, num_layers
    scale = 1.0 / jnp.sqrt(hidden_size)
    rec_w = jnp.zeros((L * H, L * 4 * H), jnp.float32)
    biases = []
    w_ih0 = None
    for layer in range(L):
        din = input_size if layer == 0 else H
        key, k1, k2, k3, k4 = jax.random.split(key, 5)
        w_ih = jax.random.uniform(k1, (4 * H, din), jnp.float32, -scale, scale)
        w_hh = jax.random.uniform(k2, (4 * H, H), jnp.float32, -scale, scale)
        b_ih = jax.random.uniform(k3, (4 * H,), jnp.float32, -scale, scale)
        b_hh = jax.random.uniform(k4, (4 * H,), jnp.float32, -scale, scale)
        biases.append(_reorder_gates((b_ih + b_hh)[None, :]))
        if layer == 0:
            w_ih0 = _reorder_gates(w_ih.T)                       # (Din, 4H)
        else:
            rec_w = rec_w.at[(layer - 1) * H:layer * H,
                             layer * 4 * H:(layer + 1) * 4 * H].set(
                _reorder_gates(w_ih.T))
        rec_w = rec_w.at[layer * H:(layer + 1) * H,
                         layer * 4 * H:(layer + 1) * 4 * H].set(
            _reorder_gates(w_hh.T))
    key, k5, k6 = jax.random.split(key, 3)
    fc_w = jax.random.uniform(k5, (1, H), jnp.float32, -scale, scale)
    fc_b = jax.random.uniform(k6, (1,), jnp.float32, -scale, scale)
    return {"w_ih0": w_ih0, "rec_w": rec_w,
            "b": jnp.concatenate(biases, axis=0),
            "fc_w_t": fc_w.T, "fc_b": fc_b[None, :]}


def reference_forward(x, params):
    """Pure-JAX f32 reference (plain layer-by-layer recurrence, no wavefront)."""
    B, T, _ = x.shape
    H = params["fc_w_t"].shape[0]
    L = params["b"].shape[0]
    layer_in = x
    for l in range(L):
        w_ih = (params["w_ih0"] if l == 0 else
                params["rec_w"][(l - 1) * H:l * H, l * 4 * H:(l + 1) * 4 * H])
        w_hh = params["rec_w"][l * H:(l + 1) * H, l * 4 * H:(l + 1) * 4 * H]
        b = params["b"][l]
        h = jnp.zeros((B, H), jnp.float32)
        c = jnp.zeros((B, H), jnp.float32)
        outs = []
        for t in range(T):
            gates = layer_in[:, t, :] @ w_ih + h @ w_hh + b
            sig = jax.nn.sigmoid(gates[:, :3 * H])
            g = jnp.tanh(gates[:, 3 * H:])
            c = sig[:, H:2 * H] * c + sig[:, :H] * g
            h = sig[:, 2 * H:3 * H] * jnp.tanh(c)
            outs.append(h)
        layer_in = jnp.stack(outs, axis=1)
    return layer_in[:, -1, :] @ params["fc_w_t"] + params["fc_b"]


if __name__ == "__main__":
    B, T, INPUT, HIDDEN, NUM_LAYERS = 8, 8, 16, 32, 2
    key = jax.random.PRNGKey(0)
    kx, kp = jax.random.split(key)
    x = jax.random.normal(kx, (B, T, INPUT), jnp.float32)
    params = init_params(kp, INPUT, HIDDEN, NUM_LAYERS)

    out = torch_lstm_forward(x, params)
    jax.block_until_ready(out)
    assert out.shape == (B, 1)

    ref = reference_forward(x, params)
    # bf16 MXU operands (f32 accumulate) vs f32 reference -> loose tolerance.
    assert jnp.allclose(out, ref, rtol=5e-2, atol=5e-2), (out, ref)
    print("KERNEL_OK")
</pallas_src>

<mosaic_0001>
module attributes {stable_mosaic.version = 11 : i64} {
  func.func @_wavefront_lstm_fc_kernel(%arg0: memref<64x16xf32, #tpu.memory_space<vmem>>, %arg1: memref<16x128xf32, #tpu.memory_space<vmem>>, %arg2: memref<64x256xf32, #tpu.memory_space<vmem>>, %arg3: memref<2x128xf32, #tpu.memory_space<vmem>>, %arg4: memref<32x1xf32, #tpu.memory_space<vmem>>, %arg5: memref<1x1xf32, #tpu.memory_space<vmem>>, %arg6: memref<8x1xf32, #tpu.memory_space<vmem>>) attributes {dimension_semantics = [], scalar_prefetch = 0 : i64, scratch_operands = 0 : i64, tpu.core_type = #tpu.core_type<tc>} {
    %c0 = arith.constant 0 : index
    %c0_0 = arith.constant 0 : index
    %0 = vector.load %arg2[%c0, %c0_0] : memref<64x256xf32, #tpu.memory_space<vmem>>, vector<64x256xf32>
    %1 = arith.truncf %0 : vector<64x256xf32> to vector<64x256xbf16>
    %c0_1 = arith.constant 0 : index
    %c0_2 = arith.constant 0 : index
    %2 = vector.load %arg3[%c0_1, %c0_2] : memref<2x128xf32, #tpu.memory_space<vmem>>, vector<2x128xf32>
    %c0_3 = arith.constant 0 : index
    %c0_4 = arith.constant 0 : index
    %3 = vector.load %arg0[%c0_3, %c0_4] : memref<64x16xf32, #tpu.memory_space<vmem>>, vector<64x16xf32>
    %4 = arith.truncf %3 : vector<64x16xf32> to vector<64x16xbf16>
    %c0_5 = arith.constant 0 : index
    %c0_6 = arith.constant 0 : index
    %5 = vector.load %arg1[%c0_5, %c0_6] : memref<16x128xf32, #tpu.memory_space<vmem>>, vector<16x128xf32>
    %6 = arith.truncf %5 : vector<16x128xf32> to vector<16x128xbf16>
    %cst = arith.constant dense<0.000000e+00> : vector<64x128xf32>
    %7 = tpu.matmul %4, %6, %cst {dimension_numbers = #tpu.dot_dimension_numbers<[1], [0], [0], [1], [0, 0, 1, 1], [], []>} : vector<64x16xbf16>, vector<16x128xbf16>, vector<64x128xf32> -> vector<64x128xf32>
    %8 = vector.extract_strided_slice %2 {offsets = [0, 0], sizes = [1, 128], strides = [1, 1]} : vector<2x128xf32> to vector<1x128xf32>
    %9 = vector.broadcast %8 : vector<1x128xf32> to vector<64x128xf32>
    %10 = arith.addf %7, %9 : vector<64x128xf32>
    %cst_7 = arith.constant 0.000000e+00 : f32
    %11 = vector.broadcast %cst_7 : f32 to vector<8x32xf32>
    %cst_8 = arith.constant 0.000000e+00 : f32
    %12 = vector.broadcast %cst_8 : f32 to vector<8x32xf32>
    %cst_9 = arith.constant 0.000000e+00 : f32
    %13 = vector.broadcast %cst_9 : f32 to vector<8x32xf32>
    %cst_10 = arith.constant 0.000000e+00 : f32
    %14 = vector.broadcast %cst_10 : f32 to vector<8x32xf32>
    %15 = tpu.concatenate %11, %12 in 1 : vector<8x32xf32>, vector<8x32xf32> -> vector<8x64xf32>
    %16 = arith.truncf %15 : vector<8x64xf32> to vector<8x64xbf16>
    %cst_11 = arith.constant dense<0.000000e+00> : vector<8x256xf32>
    %17 = tpu.matmul %16, %1, %cst_11 {dimension_numbers = #tpu.dot_dimension_numbers<[1], [0], [0], [1], [0, 0, 1, 1], [], []>} : vector<8x64xbf16>, vector<64x256xbf16>, vector<8x256xf32> -> vector<8x256xf32>
    %18 = vector.extract_strided_slice %10 {offsets = [0, 0], sizes = [8, 128], strides = [1, 1]} : vector<64x128xf32> to vector<8x128xf32>
    %19 = vector.extract_strided_slice %17 {offsets = [0, 0], sizes = [8, 128], strides = [1, 1]} : vector<8x256xf32> to vector<8x128xf32>
    %20 = arith.addf %18, %19 : vector<8x128xf32>
    %21 = vector.extract_strided_slice %20 {offsets = [0, 0], sizes = [8, 96], strides = [1, 1]} : vector<8x128xf32> to vector<8x96xf32>
    %22 = arith.negf %21 : vector<8x96xf32>
    %23 = math.exp %22 : vector<8x96xf32>
    %cst_12 = arith.constant 1.000000e+00 : f32
    %24 = vector.broadcast %cst_12 : f32 to vector<8x96xf32>
    %25 = arith.addf %24, %23 : vector<8x96xf32>
    %26 = arith.divf %24, %25 : vector<8x96xf32>
    %27 = vector.extract_strided_slice %20 {offsets = [0, 96], sizes = [8, 32], strides = [1, 1]} : vector<8x128xf32> to vector<8x32xf32>
    %28 = math.tanh %27 : vector<8x32xf32>
    %29 = vector.extract_strided_slice %26 {offsets = [0, 0], sizes = [8, 32], strides = [1, 1]} : vector<8x96xf32> to vector<8x32xf32>
    %30 = vector.extract_strided_slice %26 {offsets = [0, 32], sizes = [8, 32], strides = [1, 1]} : vector<8x96xf32> to vector<8x32xf32>
    %31 = vector.extract_strided_slice %26 {offsets = [0, 64], sizes = [8, 32], strides = [1, 1]} : vector<8x96xf32> to vector<8x32xf32>
    %32 = arith.mulf %30, %13 : vector<8x32xf32>
    %33 = arith.mulf %29, %28 : vector<8x32xf32>
    %34 = arith.addf %32, %33 : vector<8x32xf32>
    %35 = math.tanh %34 : vector<8x32xf32>
    %36 = arith.mulf %31, %35 : vector<8x32xf32>
    %37 = tpu.concatenate %36, %12 in 1 : vector<8x32xf32>, vector<8x32xf32> -> vector<8x64xf32>
    %38 = arith.truncf %37 : vector<8x64xf32> to vector<8x64xbf16>
    %cst_13 = arith.constant dense<0.000000e+00> : vector<8x256xf32>
    %39 = tpu.matmul %38, %1, %cst_13 {dimension_numbers = #tpu.dot_dimension_numbers<[1], [0], [0], [1], [0, 0, 1, 1], [], []>} : vector<8x64xbf16>, vector<64x256xbf16>, vector<8x256xf32> -> vector<8x256xf32>
    %40 = vector.extract_strided_slice %10 {offsets = [8, 0], sizes = [8, 128], strides = [1, 1]} : vector<64x128xf32> to vector<8x128xf32>
    %41 = vector.extract_strided_slice %39 {offsets = [0, 0], sizes = [8, 128], strides = [1, 1]} : vector<8x256xf32> to vector<8x128xf32>
    %42 = arith.addf %40, %41 : vector<8x128xf32>
    %43 = vector.extract_strided_slice %42 {offsets = [0, 0], sizes = [8, 96], strides = [1, 1]} : vector<8x128xf32> to vector<8x96xf32>
    %44 = arith.negf %43 : vector<8x96xf32>
    %45 = math.exp %44 : vector<8x96xf32>
    %cst_14 = arith.constant 1.000000e+00 : f32
    %46 = vector.broadcast %cst_14 : f32 to vector<8x96xf32>
    %47 = arith.addf %46, %45 : vector<8x96xf32>
    %48 = arith.divf %46, %47 : vector<8x96xf32>
    %49 = vector.extract_strided_slice %42 {offsets = [0, 96], sizes = [8, 32], strides = [1, 1]} : vector<8x128xf32> to vector<8x32xf32>
    %50 = math.tanh %49 : vector<8x32xf32>
    %51 = vector.extract_strided_slice %48 {offsets = [0, 0], sizes = [8, 32], strides = [1, 1]} : vector<8x96xf32> to vector<8x32xf32>
    %52 = vector.extract_strided_slice %48 {offsets = [0, 32], sizes = [8, 32], strides = [1, 1]} : vector<8x96xf32> to vector<8x32xf32>
    %53 = vector.extract_strided_slice %48 {offsets = [0, 64], sizes = [8, 32], strides = [1, 1]} : vector<8x96xf32> to vector<8x32xf32>
    %54 = arith.mulf %52, %34 : vector<8x32xf32>
    %55 = arith.mulf %51, %50 : vector<8x32xf32>
    %56 = arith.addf %54, %55 : vector<8x32xf32>
    %57 = math.tanh %56 : vector<8x32xf32>
    %58 = arith.mulf %53, %57 : vector<8x32xf32>
    %59 = vector.extract_strided_slice %2 {offsets = [1, 0], sizes = [1, 128], strides = [1, 1]} : vector<2x128xf32> to vector<1x128xf32>
    %60 = vector.extract_strided_slice %39 {offsets = [0, 128], sizes = [8, 128], strides = [1, 1]} : vector<8x256xf32> to vector<8x128xf32>
    %61 = vector.broadcast %59 : vector<1x128xf32> to vector<8x128xf32>
    %62 = arith.addf %61, %60 : vector<8x128xf32>
    %63 = vector.extract_strided_slice %62 {offsets = [0, 0], sizes = [8, 96], strides = [1, 1]} : vector<8x128xf32> to vector<8x96xf32>
    %64 = arith.negf %63 : vector<8x96xf32>
    %65 = math.exp %64 : vector<8x96xf32>
    %cst_15 = arith.constant 1.000000e+00 : f32
    %66 = vector.broadcast %cst_15 : f32 to vector<8x96xf32>
    %67 = arith.addf %66, %65 : vector<8x96xf32>
    %68 = arith.divf %66, %67 : vector<8x96xf32>
    %69 = vector.extract_strided_slice %62 {offsets = [0, 96], sizes = [8, 32], strides = [1, 1]} : vector<8x128xf32> to vector<8x32xf32>
    %70 = math.tanh %69 : vector<8x32xf32>
    %71 = vector.extract_strided_slice %68 {offsets = [0, 0], sizes = [8, 32], strides = [1, 1]} : vector<8x96xf32> to vector<8x32xf32>
    %72 = vector.extract_strided_slice %68 {offsets = [0, 32], sizes = [8, 32], strides = [1, 1]} : vector<8x96xf32> to vector<8x32xf32>
    %73 = vector.extract_strided_slice %68 {offsets = [0, 64], sizes = [8, 32], strides = [1, 1]} : vector<8x96xf32> to vector<8x32xf32>
    %74 = arith.mulf %72, %14 : vector<8x32xf32>
    %75 = arith.mulf %71, %70 : vector<8x32xf32>
    %76 = arith.addf %74, %75 : vector<8x32xf32>
    %77 = math.tanh %76 : vector<8x32xf32>
    %78 = arith.mulf %73, %77 : vector<8x32xf32>
    %79 = tpu.concatenate %58, %78 in 1 : vector<8x32xf32>, vector<8x32xf32> -> vector<8x64xf32>
    %80 = arith.truncf %79 : vector<8x64xf32> to vector<8x64xbf16>
    %cst_16 = arith.constant dense<0.000000e+00> : vector<8x256xf32>
    %81 = tpu.matmul %80, %1, %cst_16 {dimension_numbers = #tpu.dot_dimension_numbers<[1], [0], [0], [1], [0, 0, 1, 1], [], []>} : vector<8x64xbf16>, vector<64x256xbf16>, vector<8x256xf32> -> vector<8x256xf32>
    %82 = vector.extract_strided_slice %10 {offsets = [16, 0], sizes = [8, 128], strides = [1, 1]} : vector<64x128xf32> to vector<8x128xf32>
    %83 = vector.extract_strided_slice %81 {offsets = [0, 0], sizes = [8, 128], strides = [1, 1]} : vector<8x256xf32> to vector<8x128xf32>
    %84 = arith.addf %82, %83 : vector<8x128xf32>
    %85 = vector.extract_strided_slice %84 {offsets = [0, 0], sizes = [8, 96], strides = [1, 1]} : vector<8x128xf32> to vector<8x96xf32>
    %86 = arith.negf %85 : vector<8x96xf32>
    %87 = math.exp %86 : vector<8x96xf32>
    %cst_17 = arith.constant 1.000000e+00 : f32
    %88 = vector.broadcast %cst_17 : f32 to vector<8x96xf32>
    %89 = arith.addf %88, %87 : vector<8x96xf32>
    %90 = arith.divf %88, %89 : vector<8x96xf32>
    %91 = vector.extract_strided_slice %84 {offsets = [0, 96], sizes = [8, 32], strides = [1, 1]} : vector<8x128xf32> to vector<8x32xf32>
    %92 = math.tanh %91 : vector<8x32xf32>
    %93 = vector.extract_strided_slice %90 {offsets = [0, 0], sizes = [8, 32], strides = [1, 1]} : vector<8x96xf32> to vector<8x32xf32>
    %94 = vector.extract_strided_slice %90 {offsets = [0, 32], sizes = [8, 32], strides = [1, 1]} : vector<8x96xf32> to vector<8x32xf32>
    %95 = vector.extract_strided_slice %90 {offsets = [0, 64], sizes = [8, 32], strides = [1, 1]} : vector<8x96xf32> to vector<8x32xf32>
    %96 = arith.mulf %94, %56 : vector<8x32xf32>
    %97 = arith.mulf %93, %92 : vector<8x32xf32>
    %98 = arith.addf %96, %97 : vector<8x32xf32>
    %99 = math.tanh %98 : vector<8x32xf32>
    %100 = arith.mulf %95, %99 : vector<8x32xf32>
    %101 = vector.extract_strided_slice %2 {offsets = [1, 0], sizes = [1, 128], strides = [1, 1]} : vector<2x128xf32> to vector<1x128xf32>
    %102 = vector.extract_strided_slice %81 {offsets = [0, 128], sizes = [8, 128], strides = [1, 1]} : vector<8x256xf32> to vector<8x128xf32>
    %103 = vector.broadcast %101 : vector<1x128xf32> to vector<8x128xf32>
    %104 = arith.addf %103, %102 : vector<8x128xf32>
    %105 = vector.extract_strided_slice %104 {offsets = [0, 0], sizes = [8, 96], strides = [1, 1]} : vector<8x128xf32> to vector<8x96xf32>
    %106 = arith.negf %105 : vector<8x96xf32>
    %107 = math.exp %106 : vector<8x96xf32>
    %cst_18 = arith.constant 1.000000e+00 : f32
    %108 = vector.broadcast %cst_18 : f32 to vector<8x96xf32>
    %109 = arith.addf %108, %107 : vector<8x96xf32>
    %110 = arith.divf %108, %109 : vector<8x96xf32>
    %111 = vector.extract_strided_slice %104 {offsets = [0, 96], sizes = [8, 32], strides = [1, 1]} : vector<8x128xf32> to vector<8x32xf32>
    %112 = math.tanh %111 : vector<8x32xf32>
    %113 = vector.extract_strided_slice %110 {offsets = [0, 0], sizes = [8, 32], strides = [1, 1]} : vector<8x96xf32> to vector<8x32xf32>
    %114 = vector.extract_strided_slice %110 {offsets = [0, 32], sizes = [8, 32], strides = [1, 1]} : vector<8x96xf32> to vector<8x32xf32>
    %115 = vector.extract_strided_slice %110 {offsets = [0, 64], sizes = [8, 32], strides = [1, 1]} : vector<8x96xf32> to vector<8x32xf32>
    %116 = arith.mulf %114, %76 : vector<8x32xf32>
    %117 = arith.mulf %113, %112 : vector<8x32xf32>
    %118 = arith.addf %116, %117 : vector<8x32xf32>
    %119 = math.tanh %118 : vector<8x32xf32>
    %120 = arith.mulf %115, %119 : vector<8x32xf32>
    %121 = tpu.concatenate %100, %120 in 1 : vector<8x32xf32>, vector<8x32xf32> -> vector<8x64xf32>
    %122 = arith.truncf %121 : vector<8x64xf32> to vector<8x64xbf16>
    %cst_19 = arith.constant dense<0.000000e+00> : vector<8x256xf32>
    %123 = tpu.matmul %122, %1, %cst_19 {dimension_numbers = #tpu.dot_dimension_numbers<[1], [0], [0], [1], [0, 0, 1, 1], [], []>} : vector<8x64xbf16>, vector<64x256xbf16>, vector<8x256xf32> -> vector<8x256xf32>
    %124 = vector.extract_strided_slice %10 {offsets = [24, 0], sizes = [8, 128], strides = [1, 1]} : vector<64x128xf32> to vector<8x128xf32>
    %125 = vector.extract_strided_slice %123 {offsets = [0, 0], sizes = [8, 128], strides = [1, 1]} : vector<8x256xf32> to vector<8x128xf32>
    %126 = arith.addf %124, %125 : vector<8x128xf32>
    %127 = vector.extract_strided_slice %126 {offsets = [0, 0], sizes = [8, 96], strides = [1, 1]} : vector<8x128xf32> to vector<8x96xf32>
    %128 = arith.negf %127 : vector<8x96xf32>
    %129 = math.exp %128 : vector<8x96xf32>
    %cst_20 = arith.constant 1.000000e+00 : f32
    %130 = vector.broadcast %cst_20 : f32 to vector<8x96xf32>
    %131 = arith.addf %130, %129 : vector<8x96xf32>
    %132 = arith.divf %130, %131 : vector<8x96xf32>
    %133 = vector.extract_strided_slice %126 {offsets = [0, 96], sizes = [8, 32], strides = [1, 1]} : vector<8x128xf32> to vector<8x32xf32>
    %134 = math.tanh %133 : vector<8x32xf32>
    %135 = vector.extract_strided_slice %132 {offsets = [0, 0], sizes = [8, 32], strides = [1, 1]} : vector<8x96xf32> to vector<8x32xf32>
    %136 = vector.extract_strided_slice %132 {offsets = [0, 32], sizes = [8, 32], strides = [1, 1]} : vector<8x96xf32> to vector<8x32xf32>
    %137 = vector.extract_strided_slice %132 {offsets = [0, 64], sizes = [8, 32], strides = [1, 1]} : vector<8x96xf32> to vector<8x32xf32>
    %138 = arith.mulf %136, %98 : vector<8x32xf32>
    %139 = arith.mulf %135, %134 : vector<8x32xf32>
    %140 = arith.addf %138, %139 : vector<8x32xf32>
    %141 = math.tanh %140 : vector<8x32xf32>
    %142 = arith.mulf %137, %141 : vector<8x32xf32>
    %143 = vector.extract_strided_slice %2 {offsets = [1, 0], sizes = [1, 128], strides = [1, 1]} : vector<2x128xf32> to vector<1x128xf32>
    %144 = vector.extract_strided_slice %123 {offsets = [0, 128], sizes = [8, 128], strides = [1, 1]} : vector<8x256xf32> to vector<8x128xf32>
    %145 = vector.broadcast %143 : vector<1x128xf32> to vector<8x128xf32>
    %146 = arith.addf %145, %144 : vector<8x128xf32>
    %147 = vector.extract_strided_slice %146 {offsets = [0, 0], sizes = [8, 96], strides = [1, 1]} : vector<8x128xf32> to vector<8x96xf32>
    %148 = arith.negf %147 : vector<8x96xf32>
    %149 = math.exp %148 : vector<8x96xf32>
    %cst_21 = arith.constant 1.000000e+00 : f32
    %150 = vector.broadcast %cst_21 : f32 to vector<8x96xf32>
    %151 = arith.addf %150, %149 : vector<8x96xf32>
    %152 = arith.divf %150, %151 : vector<8x96xf32>
    %153 = vector.extract_strided_slice %146 {offsets = [0, 96], sizes = [8, 32], strides = [1, 1]} : vector<8x128xf32> to vector<8x32xf32>
    %154 = math.tanh %153 : vector<8x32xf32>
    %155 = vector.extract_strided_slice %152 {offsets = [0, 0], sizes = [8, 32], strides = [1, 1]} : vector<8x96xf32> to vector<8x32xf32>
    %156 = vector.extract_strided_slice %152 {offsets = [0, 32], sizes = [8, 32], strides = [1, 1]} : vector<8x96xf32> to vector<8x32xf32>
    %157 = vector.extract_strided_slice %152 {offsets = [0, 64], sizes = [8, 32], strides = [1, 1]} : vector<8x96xf32> to vector<8x32xf32>
    %158 = arith.mulf %156, %118 : vector<8x32xf32>
    %159 = arith.mulf %155, %154 : vector<8x32xf32>
    %160 = arith.addf %158, %159 : vector<8x32xf32>
    %161 = math.tanh %160 : vector<8x32xf32>
    %162 = arith.mulf %157, %161 : vector<8x32xf32>
    %163 = tpu.concatenate %142, %162 in 1 : vector<8x32xf32>, vector<8x32xf32> -> vector<8x64xf32>
    %164 = arith.truncf %163 : vector<8x64xf32> to vector<8x64xbf16>
    %cst_22 = arith.constant dense<0.000000e+00> : vector<8x256xf32>
    %165 = tpu.matmul %164, %1, %cst_22 {dimension_numbers = #tpu.dot_dimension_numbers<[1], [0], [0], [1], [0, 0, 1, 1], [], []>} : vector<8x64xbf16>, vector<64x256xbf16>, vector<8x256xf32> -> vector<8x256xf32>
    %166 = vector.extract_strided_slice %10 {offsets = [32, 0], sizes = [8, 128], strides = [1, 1]} : vector<64x128xf32> to vector<8x128xf32>
    %167 = vector.extract_strided_slice %165 {offsets = [0, 0], sizes = [8, 128], strides = [1, 1]} : vector<8x256xf32> to vector<8x128xf32>
    %168 = arith.addf %166, %167 : vector<8x128xf32>
    %169 = vector.extract_strided_slice %168 {offsets = [0, 0], sizes = [8, 96], strides = [1, 1]} : vector<8x128xf32> to vector<8x96xf32>
    %170 = arith.negf %169 : vector<8x96xf32>
    %171 = math.exp %170 : vector<8x96xf32>
    %cst_23 = arith.constant 1.000000e+00 : f32
    %172 = vector.broadcast %cst_23 : f32 to vector<8x96xf32>
    %173 = arith.addf %172, %171 : vector<8x96xf32>
    %174 = arith.divf %172, %173 : vector<8x96xf32>
    %175 = vector.extract_strided_slice %168 {offsets = [0, 96], sizes = [8, 32], strides = [1, 1]} : vector<8x128xf32> to vector<8x32xf32>
    %176 = math.tanh %175 : vector<8x32xf32>
    %177 = vector.extract_strided_slice %174 {offsets = [0, 0], sizes = [8, 32], strides = [1, 1]} : vector<8x96xf32> to vector<8x32xf32>
    %178 = vector.extract_strided_slice %174 {offsets = [0, 32], sizes = [8, 32], strides = [1, 1]} : vector<8x96xf32> to vector<8x32xf32>
    %179 = vector.extract_strided_slice %174 {offsets = [0, 64], sizes = [8, 32], strides = [1, 1]} : vector<8x96xf32> to vector<8x32xf32>
    %180 = arith.mulf %178, %140 : vector<8x32xf32>
    %181 = arith.mulf %177, %176 : vector<8x32xf32>
    %182 = arith.addf %180, %181 : vector<8x32xf32>
    %183 = math.tanh %182 : vector<8x32xf32>
    %184 = arith.mulf %179, %183 : vector<8x32xf32>
    %185 = vector.extract_strided_slice %2 {offsets = [1, 0], sizes = [1, 128], strides = [1, 1]} : vector<2x128xf32> to vector<1x128xf32>
    %186 = vector.extract_strided_slice %165 {offsets = [0, 128], sizes = [8, 128], strides = [1, 1]} : vector<8x256xf32> to vector<8x128xf32>
    %187 = vector.broadcast %185 : vector<1x128xf32> to vector<8x128xf32>
    %188 = arith.addf %187, %186 : vector<8x128xf32>
    %189 = vector.extract_strided_slice %188 {offsets = [0, 0], sizes = [8, 96], strides = [1, 1]} : vector<8x128xf32> to vector<8x96xf32>
    %190 = arith.negf %189 : vector<8x96xf32>
    %191 = math.exp %190 : vector<8x96xf32>
    %cst_24 = arith.constant 1.000000e+00 : f32
    %192 = vector.broadcast %cst_24 : f32 to vector<8x96xf32>
    %193 = arith.addf %192, %191 : vector<8x96xf32>
    %194 = arith.divf %192, %193 : vector<8x96xf32>
    %195 = vector.extract_strided_slice %188 {offsets = [0, 96], sizes = [8, 32], strides = [1, 1]} : vector<8x128xf32> to vector<8x32xf32>
    %196 = math.tanh %195 : vector<8x32xf32>
    %197 = vector.extract_strided_slice %194 {offsets = [0, 0], sizes = [8, 32], strides = [1, 1]} : vector<8x96xf32> to vector<8x32xf32>
    %198 = vector.extract_strided_slice %194 {offsets = [0, 32], sizes = [8, 32], strides = [1, 1]} : vector<8x96xf32> to vector<8x32xf32>
    %199 = vector.extract_strided_slice %194 {offsets = [0, 64], sizes = [8, 32], strides = [1, 1]} : vector<8x96xf32> to vector<8x32xf32>
    %200 = arith.mulf %198, %160 : vector<8x32xf32>
    %201 = arith.mulf %197, %196 : vector<8x32xf32>
    %202 = arith.addf %200, %201 : vector<8x32xf32>
    %203 = math.tanh %202 : vector<8x32xf32>
    %204 = arith.mulf %199, %203 : vector<8x32xf32>
    %205 = tpu.concatenate %184, %204 in 1 : vector<8x32xf32>, vector<8x32xf32> -> vector<8x64xf32>
    %206 = arith.truncf %205 : vector<8x64xf32> to vector<8x64xbf16>
    %cst_25 = arith.constant dense<0.000000e+00> : vector<8x256xf32>
    %207 = tpu.matmul %206, %1, %cst_25 {dimension_numbers = #tpu.dot_dimension_numbers<[1], [0], [0], [1], [0, 0, 1, 1], [], []>} : vector<8x64xbf16>, vector<64x256xbf16>, vector<8x256xf32> -> vector<8x256xf32>
    %208 = vector.extract_strided_slice %10 {offsets = [40, 0], sizes = [8, 128], strides = [1, 1]} : vector<64x128xf32> to vector<8x128xf32>
    %209 = vector.extract_strided_slice %207 {offsets = [0, 0], sizes = [8, 128], strides = [1, 1]} : vector<8x256xf32> to vector<8x128xf32>
    %210 = arith.addf %208, %209 : vector<8x128xf32>
    %211 = vector.extract_strided_slice %210 {offsets = [0, 0], sizes = [8, 96], strides = [1, 1]} : vector<8x128xf32> to vector<8x96xf32>
    %212 = arith.negf %211 : vector<8x96xf32>
    %213 = math.exp %212 : vector<8x96xf32>
    %cst_26 = arith.constant 1.000000e+00 : f32
    %214 = vector.broadcast %cst_26 : f32 to vector<8x96xf32>
    %215 = arith.addf %214, %213 : vector<8x96xf32>
    %216 = arith.divf %214, %215 : vector<8x96xf32>
    %217 = vector.extract_strided_slice %210 {offsets = [0, 96], sizes = [8, 32], strides = [1, 1]} : vector<8x128xf32> to vector<8x32xf32>
    %218 = math.tanh %217 : vector<8x32xf32>
    %219 = vector.extract_strided_slice %216 {offsets = [0, 0], sizes = [8, 32], strides = [1, 1]} : vector<8x96xf32> to vector<8x32xf32>
    %220 = vector.extract_strided_slice %216 {offsets = [0, 32], sizes = [8, 32], strides = [1, 1]} : vector<8x96xf32> to vector<8x32xf32>
    %221 = vector.extract_strided_slice %216 {offsets = [0, 64], sizes = [8, 32], strides = [1, 1]} : vector<8x96xf32> to vector<8x32xf32>
    %222 = arith.mulf %220, %182 : vector<8x32xf32>
    %223 = arith.mulf %219, %218 : vector<8x32xf32>
    %224 = arith.addf %222, %223 : vector<8x32xf32>
    %225 = math.tanh %224 : vector<8x32xf32>
    %226 = arith.mulf %221, %225 : vector<8x32xf32>
    %227 = vector.extract_strided_slice %2 {offsets = [1, 0], sizes = [1, 128], strides = [1, 1]} : vector<2x128xf32> to vector<1x128xf32>
    %228 = vector.extract_strided_slice %207 {offsets = [0, 128], sizes = [8, 128], strides = [1, 1]} : vector<8x256xf32> to vector<8x128xf32>
    %229 = vector.broadcast %227 : vector<1x128xf32> to vector<8x128xf32>
    %230 = arith.addf %229, %228 : vector<8x128xf32>
    %231 = vector.extract_strided_slice %230 {offsets = [0, 0], sizes = [8, 96], strides = [1, 1]} : vector<8x128xf32> to vector<8x96xf32>
    %232 = arith.negf %231 : vector<8x96xf32>
    %233 = math.exp %232 : vector<8x96xf32>
    %cst_27 = arith.constant 1.000000e+00 : f32
    %234 = vector.broadcast %cst_27 : f32 to vector<8x96xf32>
    %235 = arith.addf %234, %233 : vector<8x96xf32>
    %236 = arith.divf %234, %235 : vector<8x96xf32>
    %237 = vector.extract_strided_slice %230 {offsets = [0, 96], sizes = [8, 32], strides = [1, 1]} : vector<8x128xf32> to vector<8x32xf32>
    %238 = math.tanh %237 : vector<8x32xf32>
    %239 = vector.extract_strided_slice %236 {offsets = [0, 0], sizes = [8, 32], strides = [1, 1]} : vector<8x96xf32> to vector<8x32xf32>
    %240 = vector.extract_strided_slice %236 {offsets = [0, 32], sizes = [8, 32], strides = [1, 1]} : vector<8x96xf32> to vector<8x32xf32>
    %241 = vector.extract_strided_slice %236 {offsets = [0, 64], sizes = [8, 32], strides = [1, 1]} : vector<8x96xf32> to vector<8x32xf32>
    %242 = arith.mulf %240, %202 : vector<8x32xf32>
    %243 = arith.mulf %239, %238 : vector<8x32xf32>
    %244 = arith.addf %242, %243 : vector<8x32xf32>
    %245 = math.tanh %244 : vector<8x32xf32>
    %246 = arith.mulf %241, %245 : vector<8x32xf32>
    %247 = tpu.concatenate %226, %246 in 1 : vector<8x32xf32>, vector<8x32xf32> -> vector<8x64xf32>
    %248 = arith.truncf %247 : vector<8x64xf32> to vector<8x64xbf16>
    %cst_28 = arith.constant dense<0.000000e+00> : vector<8x256xf32>
    %249 = tpu.matmul %248, %1, %cst_28 {dimension_numbers = #tpu.dot_dimension_numbers<[1], [0], [0], [1], [0, 0, 1, 1], [], []>} : vector<8x64xbf16>, vector<64x256xbf16>, vector<8x256xf32> -> vector<8x256xf32>
    %250 = vector.extract_strided_slice %10 {offsets = [48, 0], sizes = [8, 128], strides = [1, 1]} : vector<64x128xf32> to vector<8x128xf32>
    %251 = vector.extract_strided_slice %249 {offsets = [0, 0], sizes = [8, 128], strides = [1, 1]} : vector<8x256xf32> to vector<8x128xf32>
    %252 = arith.addf %250, %251 : vector<8x128xf32>
    %253 = vector.extract_strided_slice %252 {offsets = [0, 0], sizes = [8, 96], strides = [1, 1]} : vector<8x128xf32> to vector<8x96xf32>
    %254 = arith.negf %253 : vector<8x96xf32>
    %255 = math.exp %254 : vector<8x96xf32>
    %cst_29 = arith.constant 1.000000e+00 : f32
    %256 = vector.broadcast %cst_29 : f32 to vector<8x96xf32>
    %257 = arith.addf %256, %255 : vector<8x96xf32>
    %258 = arith.divf %256, %257 : vector<8x96xf32>
    %259 = vector.extract_strided_slice %252 {offsets = [0, 96], sizes = [8, 32], strides = [1, 1]} : vector<8x128xf32> to vector<8x32xf32>
    %260 = math.tanh %259 : vector<8x32xf32>
    %261 = vector.extract_strided_slice %258 {offsets = [0, 0], sizes = [8, 32], strides = [1, 1]} : vector<8x96xf32> to vector<8x32xf32>
    %262 = vector.extract_strided_slice %258 {offsets = [0, 32], sizes = [8, 32], strides = [1, 1]} : vector<8x96xf32> to vector<8x32xf32>
    %263 = vector.extract_strided_slice %258 {offsets = [0, 64], sizes = [8, 32], strides = [1, 1]} : vector<8x96xf32> to vector<8x32xf32>
    %264 = arith.mulf %262, %224 : vector<8x32xf32>
    %265 = arith.mulf %261, %260 : vector<8x32xf32>
    %266 = arith.addf %264, %265 : vector<8x32xf32>
    %267 = math.tanh %266 : vector<8x32xf32>
    %268 = arith.mulf %263, %267 : vector<8x32xf32>
    %269 = vector.extract_strided_slice %2 {offsets = [1, 0], sizes = [1, 128], strides = [1, 1]} : vector<2x128xf32> to vector<1x128xf32>
    %270 = vector.extract_strided_slice %249 {offsets = [0, 128], sizes = [8, 128], strides = [1, 1]} : vector<8x256xf32> to vector<8x128xf32>
    %271 = vector.broadcast %269 : vector<1x128xf32> to vector<8x128xf32>
    %272 = arith.addf %271, %270 : vector<8x128xf32>
    %273 = vector.extract_strided_slice %272 {offsets = [0, 0], sizes = [8, 96], strides = [1, 1]} : vector<8x128xf32> to vector<8x96xf32>
    %274 = arith.negf %273 : vector<8x96xf32>
    %275 = math.exp %274 : vector<8x96xf32>
    %cst_30 = arith.constant 1.000000e+00 : f32
    %276 = vector.broadcast %cst_30 : f32 to vector<8x96xf32>
    %277 = arith.addf %276, %275 : vector<8x96xf32>
    %278 = arith.divf %276, %277 : vector<8x96xf32>
    %279 = vector.extract_strided_slice %272 {offsets = [0, 96], sizes = [8, 32], strides = [1, 1]} : vector<8x128xf32> to vector<8x32xf32>
    %280 = math.tanh %279 : vector<8x32xf32>
    %281 = vector.extract_strided_slice %278 {offsets = [0, 0], sizes = [8, 32], strides = [1, 1]} : vector<8x96xf32> to vector<8x32xf32>
    %282 = vector.extract_strided_slice %278 {offsets = [0, 32], sizes = [8, 32], strides = [1, 1]} : vector<8x96xf32> to vector<8x32xf32>
    %283 = vector.extract_strided_slice %278 {offsets = [0, 64], sizes = [8, 32], strides = [1, 1]} : vector<8x96xf32> to vector<8x32xf32>
    %284 = arith.mulf %282, %244 : vector<8x32xf32>
    %285 = arith.mulf %281, %280 : vector<8x32xf32>
    %286 = arith.addf %284, %285 : vector<8x32xf32>
    %287 = math.tanh %286 : vector<8x32xf32>
    %288 = arith.mulf %283, %287 : vector<8x32xf32>
    %289 = tpu.concatenate %268, %288 in 1 : vector<8x32xf32>, vector<8x32xf32> -> vector<8x64xf32>
    %290 = arith.truncf %289 : vector<8x64xf32> to vector<8x64xbf16>
    %cst_31 = arith.constant dense<0.000000e+00> : vector<8x256xf32>
    %291 = tpu.matmul %290, %1, %cst_31 {dimension_numbers = #tpu.dot_dimension_numbers<[1], [0], [0], [1], [0, 0, 1, 1], [], []>} : vector<8x64xbf16>, vector<64x256xbf16>, vector<8x256xf32> -> vector<8x256xf32>
    %292 = vector.extract_strided_slice %10 {offsets = [56, 0], sizes = [8, 128], strides = [1, 1]} : vector<64x128xf32> to vector<8x128xf32>
    %293 = vector.extract_strided_slice %291 {offsets = [0, 0], sizes = [8, 128], strides = [1, 1]} : vector<8x256xf32> to vector<8x128xf32>
    %294 = arith.addf %292, %293 : vector<8x128xf32>
    %295 = vector.extract_strided_slice %294 {offsets = [0, 0], sizes = [8, 96], strides = [1, 1]} : vector<8x128xf32> to vector<8x96xf32>
    %296 = arith.negf %295 : vector<8x96xf32>
    %297 = math.exp %296 : vector<8x96xf32>
    %cst_32 = arith.constant 1.000000e+00 : f32
    %298 = vector.broadcast %cst_32 : f32 to vector<8x96xf32>
    %299 = arith.addf %298, %297 : vector<8x96xf32>
    %300 = arith.divf %298, %299 : vector<8x96xf32>
    %301 = vector.extract_strided_slice %294 {offsets = [0, 96], sizes = [8, 32], strides = [1, 1]} : vector<8x128xf32> to vector<8x32xf32>
    %302 = math.tanh %301 : vector<8x32xf32>
    %303 = vector.extract_strided_slice %300 {offsets = [0, 0], sizes = [8, 32], strides = [1, 1]} : vector<8x96xf32> to vector<8x32xf32>
    %304 = vector.extract_strided_slice %300 {offsets = [0, 32], sizes = [8, 32], strides = [1, 1]} : vector<8x96xf32> to vector<8x32xf32>
    %305 = vector.extract_strided_slice %300 {offsets = [0, 64], sizes = [8, 32], strides = [1, 1]} : vector<8x96xf32> to vector<8x32xf32>
    %306 = arith.mulf %304, %266 : vector<8x32xf32>
    %307 = arith.mulf %303, %302 : vector<8x32xf32>
    %308 = arith.addf %306, %307 : vector<8x32xf32>
    %309 = math.tanh %308 : vector<8x32xf32>
    %310 = arith.mulf %305, %309 : vector<8x32xf32>
    %311 = vector.extract_strided_slice %2 {offsets = [1, 0], sizes = [1, 128], strides = [1, 1]} : vector<2x128xf32> to vector<1x128xf32>
    %312 = vector.extract_strided_slice %291 {offsets = [0, 128], sizes = [8, 128], strides = [1, 1]} : vector<8x256xf32> to vector<8x128xf32>
    %313 = vector.broadcast %311 : vector<1x128xf32> to vector<8x128xf32>
    %314 = arith.addf %313, %312 : vector<8x128xf32>
    %315 = vector.extract_strided_slice %314 {offsets = [0, 0], sizes = [8, 96], strides = [1, 1]} : vector<8x128xf32> to vector<8x96xf32>
    %316 = arith.negf %315 : vector<8x96xf32>
    %317 = math.exp %316 : vector<8x96xf32>
    %cst_33 = arith.constant 1.000000e+00 : f32
    %318 = vector.broadcast %cst_33 : f32 to vector<8x96xf32>
    %319 = arith.addf %318, %317 : vector<8x96xf32>
    %320 = arith.divf %318, %319 : vector<8x96xf32>
    %321 = vector.extract_strided_slice %314 {offsets = [0, 96], sizes = [8, 32], strides = [1, 1]} : vector<8x128xf32> to vector<8x32xf32>
    %322 = math.tanh %321 : vector<8x32xf32>
    %323 = vector.extract_strided_slice %320 {offsets = [0, 0], sizes = [8, 32], strides = [1, 1]} : vector<8x96xf32> to vector<8x32xf32>
    %324 = vector.extract_strided_slice %320 {offsets = [0, 32], sizes = [8, 32], strides = [1, 1]} : vector<8x96xf32> to vector<8x32xf32>
    %325 = vector.extract_strided_slice %320 {offsets = [0, 64], sizes = [8, 32], strides = [1, 1]} : vector<8x96xf32> to vector<8x32xf32>
    %326 = arith.mulf %324, %286 : vector<8x32xf32>
    %327 = arith.mulf %323, %322 : vector<8x32xf32>
    %328 = arith.addf %326, %327 : vector<8x32xf32>
    %329 = math.tanh %328 : vector<8x32xf32>
    %330 = arith.mulf %325, %329 : vector<8x32xf32>
    %331 = tpu.concatenate %310, %330 in 1 : vector<8x32xf32>, vector<8x32xf32> -> vector<8x64xf32>
    %332 = arith.truncf %331 : vector<8x64xf32> to vector<8x64xbf16>
    %cst_34 = arith.constant dense<0.000000e+00> : vector<8x256xf32>
    %333 = tpu.matmul %332, %1, %cst_34 {dimension_numbers = #tpu.dot_dimension_numbers<[1], [0], [0], [1], [0, 0, 1, 1], [], []>} : vector<8x64xbf16>, vector<64x256xbf16>, vector<8x256xf32> -> vector<8x256xf32>
    %334 = vector.extract_strided_slice %2 {offsets = [1, 0], sizes = [1, 128], strides = [1, 1]} : vector<2x128xf32> to vector<1x128xf32>
    %335 = vector.extract_strided_slice %333 {offsets = [0, 128], sizes = [8, 128], strides = [1, 1]} : vector<8x256xf32> to vector<8x128xf32>
    %336 = vector.broadcast %334 : vector<1x128xf32> to vector<8x128xf32>
    %337 = arith.addf %336, %335 : vector<8x128xf32>
    %338 = vector.extract_strided_slice %337 {offsets = [0, 0], sizes = [8, 96], strides = [1, 1]} : vector<8x128xf32> to vector<8x96xf32>
    %339 = arith.negf %338 : vector<8x96xf32>
    %340 = math.exp %339 : vector<8x96xf32>
    %cst_35 = arith.constant 1.000000e+00 : f32
    %341 = vector.broadcast %cst_35 : f32 to vector<8x96xf32>
    %342 = arith.addf %341, %340 : vector<8x96xf32>
    %343 = arith.divf %341, %342 : vector<8x96xf32>
    %344 = vector.extract_strided_slice %337 {offsets = [0, 96], sizes = [8, 32], strides = [1, 1]} : vector<8x128xf32> to vector<8x32xf32>
    %345 = math.tanh %344 : vector<8x32xf32>
    %346 = vector.extract_strided_slice %343 {offsets = [0, 0], sizes = [8, 32], strides = [1, 1]} : vector<8x96xf32> to vector<8x32xf32>
    %347 = vector.extract_strided_slice %343 {offsets = [0, 32], sizes = [8, 32], strides = [1, 1]} : vector<8x96xf32> to vector<8x32xf32>
    %348 = vector.extract_strided_slice %343 {offsets = [0, 64], sizes = [8, 32], strides = [1, 1]} : vector<8x96xf32> to vector<8x32xf32>
    %349 = arith.mulf %347, %328 : vector<8x32xf32>
    %350 = arith.mulf %346, %345 : vector<8x32xf32>
    %351 = arith.addf %349, %350 : vector<8x32xf32>
    %352 = math.tanh %351 : vector<8x32xf32>
    %353 = arith.mulf %348, %352 : vector<8x32xf32>
    %c0_36 = arith.constant 0 : index
    %c0_37 = arith.constant 0 : index
    %354 = vector.load %arg4[%c0_36, %c0_37] : memref<32x1xf32, #tpu.memory_space<vmem>>, vector<32x1xf32>
    %cst_38 = arith.constant dense<0.000000e+00> : vector<8x1xf32>
    %355 = tpu.matmul %353, %354, %cst_38 {dimension_numbers = #tpu.dot_dimension_numbers<[1], [0], [0], [1], [0, 0, 1, 1], [], []>, precision = #tpu.contract_precision<fp32>} : vector<8x32xf32>, vector<32x1xf32>, vector<8x1xf32> -> vector<8x1xf32>
    %c0_39 = arith.constant 0 : index
    %c0_40 = arith.constant 0 : index
    %356 = vector.load %arg5[%c0_39, %c0_40] : memref<1x1xf32, #tpu.memory_space<vmem>>, vector<1x1xf32>
    %357 = vector.broadcast %356 : vector<1x1xf32> to vector<8x1xf32>
    %358 = arith.addf %355, %357 : vector<8x1xf32>
    %c0_41 = arith.constant 0 : index
    %c0_42 = arith.constant 0 : index
    %359 = vector.load %arg6[%c0_41, %c0_42] : memref<8x1xf32, #tpu.memory_space<vmem>>, vector<8x1xf32>
    tpu.vector_store %arg6[%c0_41, %c0_42], %358 {strides = array<i32>} : memref<8x1xf32, #tpu.memory_space<vmem>>, vector<8x1xf32>,
    return
  }
}

</mosaic_0001>

<llo_original>
// kernel: torch_lstm_forward.1
$region0: #{torch_lstm_forward.1}
  #allocation0 [shape = 'u32[]', space=smem, size = 0x4, offset = 0x4, fixed_abs, tag = 'smem constant byte address 0x4 - core index']
  #allocation1 [shape = 'u32[144,128]{1,0:T(1,128)}', space=vmem, size = 0x12000, scoped, tag = 'internal scratch']
  #allocation2 [shape = 'f32[1,1]{1,0:T(1,128)S(1)}', space=vmem, size = 0x200, scoped, tag = 'scoped memory for torch_lstm_forward.1']
  %s0 = inlined_call_operand.vmem [shape: f32[64,16], index: 0, kind: input, shape index: {}]
  %s1 = inlined_call_operand.vmem [shape: f32[16,128], index: 1, kind: input, shape index: {}]
  %s2 = inlined_call_operand.vmem [shape: f32[64,256], index: 2, kind: input, shape index: {}]
  %s3 = inlined_call_operand.vmem [shape: f32[2,128], index: 3, kind: input, shape index: {}]
  %s4 = inlined_call_operand.vmem [shape: f32[32,1], index: 4, kind: input, shape index: {}]
  %s5 = inlined_call_operand.<no memory space> [shape: f32[1,1], index: 5, kind: input, shape index: {}]
  %s6 = inlined_call_operand.vmem [shape: f32[8,1], index: 6, kind: output, shape index: {}]
  %s7 = sld [smem:[#allocation0]]
  $region34: #{torch_lstm_forward.1} parent=0
    _
  %s9 = ssub.s32 1, %s7
  %s10 = scalar_select 0, %s9, %s7
  %v11 = vstv %s5
  %12 = vst [vmem:[#allocation2] sm:$0x1] %v11
  // Predicated region
  $region2: #{torch_lstm_forward.1} parent=0 // pred_check
    _
  $region3: #{torch_lstm_forward.1} parent=0 // pred_check_branch
    %14 = sbr.rel (0) target = $region5
  $region4: #{torch_lstm_forward.1} parent=0 // pred_region
    _
  $region5: #{torch_lstm_forward.1} parent=0 // pred_fallthru
    _
  // Predicated region
  $region6: #{torch_lstm_forward.1} parent=0 // pred_check
    _
  $region7: #{torch_lstm_forward.1} parent=0 // pred_check_branch
    %16 = sbr.rel (0) target = $region9
  $region8: #{torch_lstm_forward.1} parent=0 // pred_region
    _
  $region9: #{torch_lstm_forward.1} parent=0 // pred_fallthru
    _
  // Predicated region
  $region10: #{torch_lstm_forward.1} parent=0 // pred_check
    _
  $region11: #{torch_lstm_forward.1} parent=0 // pred_check_branch
    %18 = sbr.rel (0) target = $region13
  $region12: #{torch_lstm_forward.1} parent=0 // pred_region
    _
  $region13: #{torch_lstm_forward.1} parent=0 // pred_fallthru
    _
  // Predicated region
  $region14: #{torch_lstm_forward.1} parent=0 // pred_check
    _
  $region15: #{torch_lstm_forward.1} parent=0 // pred_check_branch
    %20 = sbr.rel (0) target = $region17
  $region16: #{torch_lstm_forward.1} parent=0 // pred_region
    _
  $region17: #{torch_lstm_forward.1} parent=0 // pred_fallthru
    _
  // Predicated region
  $region18: #{torch_lstm_forward.1} parent=0 // pred_check
    _
  $region19: #{torch_lstm_forward.1} parent=0 // pred_check_branch
    %22 = sbr.rel (0) target = $region21
  $region20: #{torch_lstm_forward.1} parent=0 // pred_region
    _
  $region21: #{torch_lstm_forward.1} parent=0 // pred_fallthru
    _
  // Predicated region
  $region22: #{torch_lstm_forward.1} parent=0 // pred_check
    _
  $region23: #{torch_lstm_forward.1} parent=0 // pred_check_branch
    %24 = sbr.rel (0) target = $region25
  $region24: #{torch_lstm_forward.1} parent=0 // pred_region
    _
  $region25: #{torch_lstm_forward.1} parent=0 // pred_fallthru
    _
  %v26 = vld [vmem:[%s2] sm:$0xff]
  %v27 = vld [vmem:[%s2 + $0x8] sm:$0xff]
  %v28 = vld [vmem:[%s2 + $0x10] sm:$0xff]
  %v29 = vld [vmem:[%s2 + $0x18] sm:$0xff]
  %v30 = vld [vmem:[%s2 + $0x20] sm:$0xff]
  %v31 = vld [vmem:[%s2 + $0x28] sm:$0xff]
  %v32 = vld [vmem:[%s2 + $0x30] sm:$0xff]
  %v33 = vld [vmem:[%s2 + $0x38] sm:$0xff]
  %v34 = vld [vmem:[%s2 + $0x40] sm:$0xff]
  %v35 = vld [vmem:[%s2 + $0x48] sm:$0xff]
  %v36 = vld [vmem:[%s2 + $0x50] sm:$0xff]
  %v37 = vld [vmem:[%s2 + $0x58] sm:$0xff]
  %v38 = vld [vmem:[%s2 + $0x60] sm:$0xff]
  %v39 = vld [vmem:[%s2 + $0x68] sm:$0xff]
  %v40 = vld [vmem:[%s2 + $0x70] sm:$0xff]
  %v41 = vld [vmem:[%s2 + $0x78] sm:$0xff]
  %v42 = vpack.c.bf16 %v28, %v26
  %v43 = vpack.c.bf16 %v29, %v27
  %v44 = vpack.c.bf16 %v32, %v30
  %v45 = vpack.c.bf16 %v33, %v31
  %v46 = vpack.c.bf16 %v36, %v34
  %v47 = vpack.c.bf16 %v37, %v35
  %v48 = vpack.c.bf16 %v40, %v38
  %v49 = vpack.c.bf16 %v41, %v39
  %v50 = vld [vmem:[%s3] sm:$0x3]
  %v51 = vld [vmem:[%s0] sm:$0xff]
  %v52 = vld [vmem:[%s0 + $0x8] sm:$0xff]
  %v53 = vld [vmem:[%s0 + $0x10] sm:$0xff]
  %v54 = vld [vmem:[%s0 + $0x18] sm:$0xff]
  %v55 = vld [vmem:[%s0 + $0x20] sm:$0xff]
  %v56 = vld [vmem:[%s0 + $0x28] sm:$0xff]
  %v57 = vld [vmem:[%s0 + $0x30] sm:$0xff]
  %v58 = vld [vmem:[%s0 + $0x38] sm:$0xff]
  %v59 = vpack.c.bf16 %v52, %v51
  %v60 = vpack.c.bf16 %v54, %v53
  %v61 = vpack.c.bf16 %v56, %v55
  %v62 = vpack.c.bf16 %v58, %v57
  %v63 = vld [vmem:[%s1] sm:$0xff]
  %v64 = vld [vmem:[%s1 + $0x8] sm:$0xff]
  %v65 = vpack.c.bf16 %v64, %v63
  %v66 = vlaneseq
  %v67 = vshrl.u32 %v66, 7
  %v68 = vsub.s32 0, %v67
  %v69 = vrot.slane %v50, %v68
  %vm70 = vcmask 130048
  %v72 = vsel %vm70, %v59, 0
  %v75 = vsel %vm70, %v60, 0
  %v78 = vsel %vm70, %v61, 0
  %v81 = vsel %vm70, %v62, 0
  %83 = vmatprep.subr.bf16.mxu0 0
  %84 = vmatpush1.bf16.msra.mxu0 0
  %85 = vmatprep.subr.bf16.mxu0 0
  %86 = vmatpush1.bf16.msra.mxu0 0
  %87 = vmatprep.subr.bf16.mxu0 0
  %88 = vmatpush1.bf16.msra.mxu0 0
  %89 = vmatprep.subr.bf16.mxu0 0
  %90 = vmatpush1.bf16.msra.mxu0 0
  %91 = vmatprep.subr.bf16.mxu0 0
  %92 = vmatpush1.bf16.msra.mxu0 0
  %93 = vmatprep.subr.bf16.mxu0 0
  %94 = vmatpush1.bf16.msra.mxu0 0
  %95 = vmatprep.subr.bf16.mxu0 0
  %96 = vmatpush1.bf16.msra.mxu0 0
  %97 = vmatprep.subr.bf16.mxu0 0
  %98 = vmatpush1.bf16.msra.mxu0 %v65
  %99 = vmatprep.subr.bf16.mxu0 0
  %100 = vmatpush2.bf16.msra.mxu0 0
  %101 = vmatprep.subr.bf16.mxu0 0
  %102 = vmatpush2.bf16.msra.mxu0 0
  %103 = vmatprep.subr.bf16.mxu0 0
  %104 = vmatpush2.bf16.msra.mxu0 0
  %105 = vmatprep.subr.bf16.mxu0 0
  %106 = vmatpush2.bf16.msra.mxu0 0
  %107 = vmatprep.subr.bf16.mxu0 0
  %108 = vmatpush2.bf16.msra.mxu0 0
  %109 = vmatprep.subr.bf16.mxu0 0
  %110 = vmatpush2.bf16.msra.mxu0 0
  %111 = vmatprep.subr.bf16.mxu0 0
  %112 = vmatpush2.bf16.msra.mxu0 0
  %113 = vmatprep.subr.bf16.mxu0 0
  %114 = vmatpush2.bf16.msra.mxu0 0
  %115 = vmatprep.mubr.bf16.mxu0 0
  %116 = vmatmul.mubr.bf16.gmra.mxu0 %v72
  %v117 = vpop.f32.mrf.mxu0
  %v118 = vadd.f32 %v69, %v117
  %v119 = vpop.f32.mrf.mxu0
  %v120 = vpop.f32.mrf.mxu0
  %v121 = vadd.f32 %v69, %v120
  %v122 = vpop.f32.mrf.mxu0
  %123 = vmatprep.mubr.bf16.mxu0 0
  %124 = vmatmul.mubr.bf16.gmra.mxu0 %v75
  %v125 = vpop.f32.mrf.mxu0
  %v126 = vadd.f32 %v69, %v125
  %v127 = vpop.f32.mrf.mxu0
  %v128 = vpop.f32.mrf.mxu0
  %v129 = vadd.f32 %v69, %v128
  %v130 = vpop.f32.mrf.mxu0
  %131 = vmatprep.mubr.bf16.mxu0 0
  %132 = vmatmul.mubr.bf16.gmra.mxu0 %v78
  %v133 = vpop.f32.mrf.mxu0
  %v134 = vadd.f32 %v69, %v133
  %v135 = vpop.f32.mrf.mxu0
  %v136 = vpop.f32.mrf.mxu0
  %v137 = vadd.f32 %v69, %v136
  %v138 = vpop.f32.mrf.mxu0
  %139 = vmatprep.mubr.bf16.mxu0 0
  %140 = vmatmul.mubr.bf16.gmra.mxu0 %v81
  %v141 = vpop.f32.mrf.mxu0
  %v142 = vadd.f32 %v69, %v141
  %v143 = vpop.f32.mrf.mxu0
  %v144 = vpop.f32.mrf.mxu0
  %v145 = vadd.f32 %v69, %v144
  %v146 = vpop.f32.mrf.mxu0
  %147 = vdwg.mxu0
  %v148 = vpack.c.bf16 0.0, 0.0
  %vm149 = vcmask 523264
  %v151 = vsel %vm149, %v148, 0
  %153 = vmatprep.subr.bf16.mxu0 0
  %154 = vmatpush1.bf16.msra.mxu0 0
  %155 = vmatprep.subr.bf16.mxu0 0
  %156 = vmatpush1.bf16.msra.mxu0 0
  %157 = vmatprep.subr.bf16.mxu0 0
  %158 = vmatpush1.bf16.msra.mxu0 0
  %159 = vmatprep.subr.bf16.mxu0 0
  %160 = vmatpush1.bf16.msra.mxu0 0
  %161 = vmatprep.subr.bf16.mxu0 %v49
  %162 = vmatpush1.bf16.msra.mxu0 %v48
  %163 = vmatprep.subr.bf16.mxu0 %v47
  %164 = vmatpush1.bf16.msra.mxu0 %v46
  %165 = vmatprep.subr.bf16.mxu0 %v45
  %166 = vmatpush1.bf16.msra.mxu0 %v44
  %167 = vmatprep.subr.bf16.mxu0 %v43
  %168 = vmatpush1.bf16.msra.mxu0 %v42
  %169 = vmatprep.subr.bf16.mxu0 0
  %170 = vmatpush2.bf16.msra.mxu0 0
  %171 = vmatprep.subr.bf16.mxu0 0
  %172 = vmatpush2.bf16.msra.mxu0 0
  %173 = vmatprep.subr.bf16.mxu0 0
  %174 = vmatpush2.bf16.msra.mxu0 0
  %175 = vmatprep.subr.bf16.mxu0 0
  %176 = vmatpush2.bf16.msra.mxu0 0
  %177 = vmatprep.subr.bf16.mxu0 0
  %178 = vmatpush2.bf16.msra.mxu0 0
  %179 = vmatprep.subr.bf16.mxu0 0
  %180 = vmatpush2.bf16.msra.mxu0 0
  %181 = vmatprep.subr.bf16.mxu0 0
  %182 = vmatpush2.bf16.msra.mxu0 0
  %183 = vmatprep.subr.bf16.mxu0 0
  %184 = vmatpush2.bf16.msra.mxu0 0
  %185 = vmatprep.mubr.bf16.mxu0 0
  %186 = vmatmul.mubr.bf16.gmra.mxu0 %v151
  %v187 = vpop.f32.mrf.mxu0
  %v188 = vadd.f32 0.0, %v187
  %v189 = vpop.f32.mrf.mxu0
  %v190 = vpop.f32.mrf.mxu0
  %v191 = vpop.f32.mrf.mxu0
  %192 = vdwg.mxu0
  %v193 = vadd.f32 %v118, %v188
  %v194 = vxor.u32 %v193, 2147483648
  %v195 = vmul.f32 %v194, 1.442695
  %v196 = vpow.pop %v195
  %v197 = vadd.f32 %v196, 1.0
  %v198 = vrcp.pop %v197
  %v199 = vmul.f32 1.0, %v198
  %v200 = vtanh.pop %v193
  %v201 = vmul.f32 %v199, 0.0
  %203 = vrot.lane.b32.xlu0 %v200, 32
  %v204 = vpop.permute.xlu0 %203
  %v206 = vmul.f32 %v199, %v204
  %208 = vrot.lane.b32.xlu0 %v206, 32
  %v209 = vpop.permute.xlu0 %208
  %v211 = vadd.f32 %v201, %v209
  %v212 = vtanh.pop %v211
  %214 = vrot.lane.b32.xlu0 %v212, 32
  %v215 = vpop.permute.xlu0 %214
  %v217 = vmul.f32 %v199, %v215
  %219 = vrot.lane.b32.xlu0 %v217, 64
  %v220 = vpop.permute.xlu0 %219
  %vm222 = vcmask 261120
  %v223 = vsel %vm222, %v220, 0.0
  %v224 = vpack.c.bf16 %v223, %v223
  %v226 = vsel %vm149, %v224, 0
  %228 = vmatprep.subr.bf16.mxu0 0
  %229 = vmatpush1.bf16.msra.mxu0 0
  %230 = vmatprep.subr.bf16.mxu0 0
  %231 = vmatpush1.bf16.msra.mxu0 0
  %232 = vmatprep.subr.bf16.mxu0 0
  %233 = vmatpush1.bf16.msra.mxu0 0
  %234 = vmatprep.subr.bf16.mxu0 0
  %235 = vmatpush1.bf16.msra.mxu0 0
  %236 = vmatprep.subr.bf16.mxu0 %v49
  %237 = vmatpush1.bf16.msra.mxu0 %v48
  %238 = vmatprep.subr.bf16.mxu0 %v47
  %239 = vmatpush1.bf16.msra.mxu0 %v46
  %240 = vmatprep.subr.bf16.mxu0 %v45
  %241 = vmatpush1.bf16.msra.mxu0 %v44
  %242 = vmatprep.subr.bf16.mxu0 %v43
  %243 = vmatpush1.bf16.msra.mxu0 %v42
  %244 = vmatprep.subr.bf16.mxu0 0
  %245 = vmatpush2.bf16.msra.mxu0 0
  %246 = vmatprep.subr.bf16.mxu0 0
  %247 = vmatpush2.bf16.msra.mxu0 0
  %248 = vmatprep.subr.bf16.mxu0 0
  %249 = vmatpush2.bf16.msra.mxu0 0
  %250 = vmatprep.subr.bf16.mxu0 0
  %251 = vmatpush2.bf16.msra.mxu0 0
  %252 = vmatprep.subr.bf16.mxu0 0
  %253 = vmatpush2.bf16.msra.mxu0 0
  %254 = vmatprep.subr.bf16.mxu0 0
  %255 = vmatpush2.bf16.msra.mxu0 0
  %256 = vmatprep.subr.bf16.mxu0 0
  %257 = vmatpush2.bf16.msra.mxu0 0
  %258 = vmatprep.subr.bf16.mxu0 0
  %259 = vmatpush2.bf16.msra.mxu0 0
  %260 = vmatprep.mubr.bf16.mxu0 0
  %261 = vmatmul.mubr.bf16.gmra.mxu0 %v226
  %v262 = vpop.f32.mrf.mxu0
  %v263 = vadd.f32 0.0, %v262
  %v264 = vpop.f32.mrf.mxu0
  %v265 = vadd.f32 0.0, %v264
  %v266 = vpop.f32.mrf.mxu0
  %v267 = vpop.f32.mrf.mxu0
  %268 = vdwg.mxu0
  %v269 = vadd.f32 %v121, %v263
  %v270 = vxor.u32 %v269, 2147483648
  %v271 = vmul.f32 %v270, 1.442695
  %v272 = vpow.pop %v271
  %v273 = vadd.f32 %v272, 1.0
  %v274 = vrcp.pop %v273
  %v275 = vmul.f32 1.0, %v274
  %v276 = vtanh.pop %v269
  %v277 = vmul.f32 %v275, %v211
  %279 = vrot.lane.b32.xlu0 %v276, 32
  %v280 = vpop.permute.xlu0 %279
  %v282 = vmul.f32 %v275, %v280
  %284 = vrot.lane.b32.xlu0 %v282, 32
  %v285 = vpop.permute.xlu0 %284
  %v287 = vadd.f32 %v277, %v285
  %v288 = vtanh.pop %v287
  %290 = vrot.lane.b32.xlu0 %v288, 32
  %v291 = vpop.permute.xlu0 %290
  %v293 = vmul.f32 %v275, %v291
  %v294 = vlaneseq
  %v295 = vshrl.u32 %v294, 7
  %v296 = vsub.s32 1, %v295
  %v297 = vrot.slane %v50, %v296
  %v298 = vadd.f32 %v297, %v265
  %v299 = vxor.u32 %v298, 2147483648
  %v300 = vmul.f32 %v299, 1.442695
  %v301 = vpow.pop %v300
  %v302 = vadd.f32 %v301, 1.0
  %v303 = vrcp.pop %v302
  %v304 = vmul.f32 1.0, %v303
  %v305 = vtanh.pop %v298
  %v306 = vmul.f32 %v304, 0.0
  %308 = vrot.lane.b32.xlu0 %v305, 32
  %v309 = vpop.permute.xlu0 %308
  %v311 = vmul.f32 %v304, %v309
  %313 = vrot.lane.b32.xlu0 %v311, 32
  %v314 = vpop.permute.xlu0 %313
  %v316 = vadd.f32 %v306, %v314
  %v317 = vtanh.pop %v316
  %319 = vrot.lane.b32.xlu0 %v317, 32
  %v320 = vpop.permute.xlu0 %319
  %v322 = vmul.f32 %v304, %v320
  %324 = vrot.lane.b32.xlu0 %v293, 64
  %v325 = vpop.permute.xlu0 %324
  %328 = vrot.lane.b32.xlu0 %v322, 96
  %v329 = vpop.permute.xlu0 %328
  %v331 = vsel %vm222, %v325, %v329
  %v332 = vpack.c.bf16 %v331, %v331
  %v334 = vsel %vm149, %v332, 0
  %336 = vmatprep.subr.bf16.mxu0 0
  %337 = vmatpush1.bf16.msra.mxu0 0
  %338 = vmatprep.subr.bf16.mxu0 0
  %339 = vmatpush1.bf16.msra.mxu0 0
  %340 = vmatprep.subr.bf16.mxu0 0
  %341 = vmatpush1.bf16.msra.mxu0 0
  %342 = vmatprep.subr.bf16.mxu0 0
  %343 = vmatpush1.bf16.msra.mxu0 0
  %344 = vmatprep.subr.bf16.mxu0 %v49
  %345 = vmatpush1.bf16.msra.mxu0 %v48
  %346 = vmatprep.subr.bf16.mxu0 %v47
  %347 = vmatpush1.bf16.msra.mxu0 %v46
  %348 = vmatprep.subr.bf16.mxu0 %v45
  %349 = vmatpush1.bf16.msra.mxu0 %v44
  %350 = vmatprep.subr.bf16.mxu0 %v43
  %351 = vmatpush1.bf16.msra.mxu0 %v42
  %352 = vmatprep.subr.bf16.mxu0 0
  %353 = vmatpush2.bf16.msra.mxu0 0
  %354 = vmatprep.subr.bf16.mxu0 0
  %355 = vmatpush2.bf16.msra.mxu0 0
  %356 = vmatprep.subr.bf16.mxu0 0
  %357 = vmatpush2.bf16.msra.mxu0 0
  %358 = vmatprep.subr.bf16.mxu0 0
  %359 = vmatpush2.bf16.msra.mxu0 0
  %360 = vmatprep.subr.bf16.mxu0 0
  %361 = vmatpush2.bf16.msra.mxu0 0
  %362 = vmatprep.subr.bf16.mxu0 0
  %363 = vmatpush2.bf16.msra.mxu0 0
  %364 = vmatprep.subr.bf16.mxu0 0
  %365 = vmatpush2.bf16.msra.mxu0 0
  %366 = vmatprep.subr.bf16.mxu0 0
  %367 = vmatpush2.bf16.msra.mxu0 0
  %368 = vmatprep.mubr.bf16.mxu0 0
  %369 = vmatmul.mubr.bf16.gmra.mxu0 %v334
  %v370 = vpop.f32.mrf.mxu0
  %v371 = vadd.f32 0.0, %v370
  %v372 = vpop.f32.mrf.mxu0
  %v373 = vadd.f32 0.0, %v372
  %v374 = vpop.f32.mrf.mxu0
  %v375 = vpop.f32.mrf.mxu0
  %376 = vdwg.mxu0
  %v377 = vadd.f32 %v126, %v371
  %v378 = vxor.u32 %v377, 2147483648
  %v379 = vmul.f32 %v378, 1.442695
  %v380 = vpow.pop %v379
  %v381 = vadd.f32 %v380, 1.0
  %v382 = vrcp.pop %v381
  %v383 = vmul.f32 1.0, %v382
  %v384 = vtanh.pop %v377
  %v385 = vmul.f32 %v383, %v287
  %387 = vrot.lane.b32.xlu0 %v384, 32
  %v388 = vpop.permute.xlu0 %387
  %v390 = vmul.f32 %v383, %v388
  %392 = vrot.lane.b32.xlu0 %v390, 32
  %v393 = vpop.permute.xlu0 %392
  %v395 = vadd.f32 %v385, %v393
  %v396 = vtanh.pop %v395
  %398 = vrot.lane.b32.xlu0 %v396, 32
  %v399 = vpop.permute.xlu0 %398
  %v401 = vmul.f32 %v383, %v399
  %v402 = vadd.f32 %v297, %v373
  %v403 = vxor.u32 %v402, 2147483648
  %v404 = vmul.f32 %v403, 1.442695
  %v405 = vpow.pop %v404
  %v406 = vadd.f32 %v405, 1.0
  %v407 = vrcp.pop %v406
  %v408 = vmul.f32 1.0, %v407
  %v409 = vtanh.pop %v402
  %v410 = vmul.f32 %v408, %v316
  %412 = vrot.lane.b32.xlu0 %v409, 32
  %v413 = vpop.permute.xlu0 %412
  %v415 = vmul.f32 %v408, %v413
  %417 = vrot.lane.b32.xlu0 %v415, 32
  %v418 = vpop.permute.xlu0 %417
  %v420 = vadd.f32 %v410, %v418
  %v421 = vtanh.pop %v420
  %423 = vrot.lane.b32.xlu0 %v421, 32
  %v424 = vpop.permute.xlu0 %423
  %v426 = vmul.f32 %v408, %v424
  %428 = vrot.lane.b32.xlu0 %v401, 64
  %v429 = vpop.permute.xlu0 %428
  %432 = vrot.lane.b32.xlu0 %v426, 96
  %v433 = vpop.permute.xlu0 %432
  %v435 = vsel %vm222, %v429, %v433
  %v436 = vpack.c.bf16 %v435, %v435
  %v438 = vsel %vm149, %v436, 0
  %440 = vmatprep.subr.bf16.mxu0 0
  %441 = vmatpush1.bf16.msra.mxu0 0
  %442 = vmatprep.subr.bf16.mxu0 0
  %443 = vmatpush1.bf16.msra.mxu0 0
  %444 = vmatprep.subr.bf16.mxu0 0
  %445 = vmatpush1.bf16.msra.mxu0 0
  %446 = vmatprep.subr.bf16.mxu0 0
  %447 = vmatpush1.bf16.msra.mxu0 0
  %448 = vmatprep.subr.bf16.mxu0 %v49
  %449 = vmatpush1.bf16.msra.mxu0 %v48
  %450 = vmatprep.subr.bf16.mxu0 %v47
  %451 = vmatpush1.bf16.msra.mxu0 %v46
  %452 = vmatprep.subr.bf16.mxu0 %v45
  %453 = vmatpush1.bf16.msra.mxu0 %v44
  %454 = vmatprep.subr.bf16.mxu0 %v43
  %455 = vmatpush1.bf16.msra.mxu0 %v42
  %456 = vmatprep.subr.bf16.mxu0 0
  %457 = vmatpush2.bf16.msra.mxu0 0
  %458 = vmatprep.subr.bf16.mxu0 0
  %459 = vmatpush2.bf16.msra.mxu0 0
  %460 = vmatprep.subr.bf16.mxu0 0
  %461 = vmatpush2.bf16.msra.mxu0 0
  %462 = vmatprep.subr.bf16.mxu0 0
  %463 = vmatpush2.bf16.msra.mxu0 0
  %464 = vmatprep.subr.bf16.mxu0 0
  %465 = vmatpush2.bf16.msra.mxu0 0
  %466 = vmatprep.subr.bf16.mxu0 0
  %467 = vmatpush2.bf16.msra.mxu0 0
  %468 = vmatprep.subr.bf16.mxu0 0
  %469 = vmatpush2.bf16.msra.mxu0 0
  %470 = vmatprep.subr.bf16.mxu0 0
  %471 = vmatpush2.bf16.msra.mxu0 0
  %472 = vmatprep.mubr.bf16.mxu0 0
  %473 = vmatmul.mubr.bf16.gmra.mxu0 %v438
  %v474 = vpop.f32.mrf.mxu0
  %v475 = vadd.f32 0.0, %v474
  %v476 = vpop.f32.mrf.mxu0
  %v477 = vadd.f32 0.0, %v476
  %v478 = vpop.f32.mrf.mxu0
  %v479 = vpop.f32.mrf.mxu0
  %480 = vdwg.mxu0
  %v481 = vadd.f32 %v129, %v475
  %v482 = vxor.u32 %v481, 2147483648
  %v483 = vmul.f32 %v482, 1.442695
  %v484 = vpow.pop %v483
  %v485 = vadd.f32 %v484, 1.0
  %v486 = vrcp.pop %v485
  %v487 = vmul.f32 1.0, %v486
  %v488 = vtanh.pop %v481
  %v489 = vmul.f32 %v487, %v395
  %491 = vrot.lane.b32.xlu0 %v488, 32
  %v492 = vpop.permute.xlu0 %491
  %v494 = vmul.f32 %v487, %v492
  %496 = vrot.lane.b32.xlu0 %v494, 32
  %v497 = vpop.permute.xlu0 %496
  %v499 = vadd.f32 %v489, %v497
  %v500 = vtanh.pop %v499
  %502 = vrot.lane.b32.xlu0 %v500, 32
  %v503 = vpop.permute.xlu0 %502
  %v505 = vmul.f32 %v487, %v503
  %v506 = vadd.f32 %v297, %v477
  %v507 = vxor.u32 %v506, 2147483648
  %v508 = vmul.f32 %v507, 1.442695
  %v509 = vpow.pop %v508
  %v510 = vadd.f32 %v509, 1.0
  %v511 = vrcp.pop %v510
  %v512 = vmul.f32 1.0, %v511
  %v513 = vtanh.pop %v506
  %v514 = vmul.f32 %v512, %v420
  %516 = vrot.lane.b32.xlu0 %v513, 32
  %v517 = vpop.permute.xlu0 %516
  %v519 = vmul.f32 %v512, %v517
  %521 = vrot.lane.b32.xlu0 %v519, 32
  %v522 = vpop.permute.xlu0 %521
  %v524 = vadd.f32 %v514, %v522
  %v525 = vtanh.pop %v524
  %527 = vrot.lane.b32.xlu0 %v525, 32
  %v528 = vpop.permute.xlu0 %527
  %v530 = vmul.f32 %v512, %v528
  %532 = vrot.lane.b32.xlu0 %v505, 64
  %v533 = vpop.permute.xlu0 %532
  %536 = vrot.lane.b32.xlu0 %v530, 96
  %v537 = vpop.permute.xlu0 %536
  %v539 = vsel %vm222, %v533, %v537
  %v540 = vpack.c.bf16 %v539, %v539
  %v542 = vsel %vm149, %v540, 0
  %544 = vmatprep.subr.bf16.mxu0 0
  %545 = vmatpush1.bf16.msra.mxu0 0
  %546 = vmatprep.subr.bf16.mxu0 0
  %547 = vmatpush1.bf16.msra.mxu0 0
  %548 = vmatprep.subr.bf16.mxu0 0
  %549 = vmatpush1.bf16.msra.mxu0 0
  %550 = vmatprep.subr.bf16.mxu0 0
  %551 = vmatpush1.bf16.msra.mxu0 0
  %552 = vmatprep.subr.bf16.mxu0 %v49
  %553 = vmatpush1.bf16.msra.mxu0 %v48
  %554 = vmatprep.subr.bf16.mxu0 %v47
  %555 = vmatpush1.bf16.msra.mxu0 %v46
  %556 = vmatprep.subr.bf16.mxu0 %v45
  %557 = vmatpush1.bf16.msra.mxu0 %v44
  %558 = vmatprep.subr.bf16.mxu0 %v43
  %559 = vmatpush1.bf16.msra.mxu0 %v42
  %560 = vmatprep.subr.bf16.mxu0 0
  %561 = vmatpush2.bf16.msra.mxu0 0
  %562 = vmatprep.subr.bf16.mxu0 0
  %563 = vmatpush2.bf16.msra.mxu0 0
  %564 = vmatprep.subr.bf16.mxu0 0
  %565 = vmatpush2.bf16.msra.mxu0 0
  %566 = vmatprep.subr.bf16.mxu0 0
  %567 = vmatpush2.bf16.msra.mxu0 0
  %568 = vmatprep.subr.bf16.mxu0 0
  %569 = vmatpush2.bf16.msra.mxu0 0
  %570 = vmatprep.subr.bf16.mxu0 0
  %571 = vmatpush2.bf16.msra.mxu0 0
  %572 = vmatprep.subr.bf16.mxu0 0
  %573 = vmatpush2.bf16.msra.mxu0 0
  %574 = vmatprep.subr.bf16.mxu0 0
  %575 = vmatpush2.bf16.msra.mxu0 0
  %576 = vmatprep.mubr.bf16.mxu0 0
  %577 = vmatmul.mubr.bf16.gmra.mxu0 %v542
  %v578 = vpop.f32.mrf.mxu0
  %v579 = vadd.f32 0.0, %v578
  %v580 = vpop.f32.mrf.mxu0
  %v581 = vadd.f32 0.0, %v580
  %v582 = vpop.f32.mrf.mxu0
  %v583 = vpop.f32.mrf.mxu0
  %584 = vdwg.mxu0
  %v585 = vadd.f32 %v134, %v579
  %v586 = vxor.u32 %v585, 2147483648
  %v587 = vmul.f32 %v586, 1.442695
  %v588 = vpow.pop %v587
  %v589 = vadd.f32 %v588, 1.0
  %v590 = vrcp.pop %v589
  %v591 = vmul.f32 1.0, %v590
  %v592 = vtanh.pop %v585
  %v593 = vmul.f32 %v591, %v499
  %595 = vrot.lane.b32.xlu0 %v592, 32
  %v596 = vpop.permute.xlu0 %595
  %v598 = vmul.f32 %v591, %v596
  %600 = vrot.lane.b32.xlu0 %v598, 32
  %v601 = vpop.permute.xlu0 %600
  %v603 = vadd.f32 %v593, %v601
  %v604 = vtanh.pop %v603
  %606 = vrot.lane.b32.xlu0 %v604, 32
  %v607 = vpop.permute.xlu0 %606
  %v609 = vmul.f32 %v591, %v607
  %v610 = vadd.f32 %v297, %v581
  %v611 = vxor.u32 %v610, 2147483648
  %v612 = vmul.f32 %v611, 1.442695
  %v613 = vpow.pop %v612
  %v614 = vadd.f32 %v613, 1.0
  %v615 = vrcp.pop %v614
  %v616 = vmul.f32 1.0, %v615
  %v617 = vtanh.pop %v610
  %v618 = vmul.f32 %v616, %v524
  %620 = vrot.lane.b32.xlu0 %v617, 32
  %v621 = vpop.permute.xlu0 %620
  %v623 = vmul.f32 %v616, %v621
  %625 = vrot.lane.b32.xlu0 %v623, 32
  %v626 = vpop.permute.xlu0 %625
  %v628 = vadd.f32 %v618, %v626
  %v629 = vtanh.pop %v628
  %631 = vrot.lane.b32.xlu0 %v629, 32
  %v632 = vpop.permute.xlu0 %631
  %v634 = vmul.f32 %v616, %v632
  %636 = vrot.lane.b32.xlu0 %v609, 64
  %v637 = vpop.permute.xlu0 %636
  %640 = vrot.lane.b32.xlu0 %v634, 96
  %v641 = vpop.permute.xlu0 %640
  %v643 = vsel %vm222, %v637, %v641
  %v644 = vpack.c.bf16 %v643, %v643
  %v646 = vsel %vm149, %v644, 0
  %648 = vmatprep.subr.bf16.mxu0 0
  %649 = vmatpush1.bf16.msra.mxu0 0
  %650 = vmatprep.subr.bf16.mxu0 0
  %651 = vmatpush1.bf16.msra.mxu0 0
  %652 = vmatprep.subr.bf16.mxu0 0
  %653 = vmatpush1.bf16.msra.mxu0 0
  %654 = vmatprep.subr.bf16.mxu0 0
  %655 = vmatpush1.bf16.msra.mxu0 0
  %656 = vmatprep.subr.bf16.mxu0 %v49
  %657 = vmatpush1.bf16.msra.mxu0 %v48
  %658 = vmatprep.subr.bf16.mxu0 %v47
  %659 = vmatpush1.bf16.msra.mxu0 %v46
  %660 = vmatprep.subr.bf16.mxu0 %v45
  %661 = vmatpush1.bf16.msra.mxu0 %v44
  %662 = vmatprep.subr.bf16.mxu0 %v43
  %663 = vmatpush1.bf16.msra.mxu0 %v42
  %664 = vmatprep.subr.bf16.mxu0 0
  %665 = vmatpush2.bf16.msra.mxu0 0
  %666 = vmatprep.subr.bf16.mxu0 0
  %667 = vmatpush2.bf16.msra.mxu0 0
  %668 = vmatprep.subr.bf16.mxu0 0
  %669 = vmatpush2.bf16.msra.mxu0 0
  %670 = vmatprep.subr.bf16.mxu0 0
  %671 = vmatpush2.bf16.msra.mxu0 0
  %672 = vmatprep.subr.bf16.mxu0 0
  %673 = vmatpush2.bf16.msra.mxu0 0
  %674 = vmatprep.subr.bf16.mxu0 0
  %675 = vmatpush2.bf16.msra.mxu0 0
  %676 = vmatprep.subr.bf16.mxu0 0
  %677 = vmatpush2.bf16.msra.mxu0 0
  %678 = vmatprep.subr.bf16.mxu0 0
  %679 = vmatpush2.bf16.msra.mxu0 0
  %680 = vmatprep.mubr.bf16.mxu0 0
  %681 = vmatmul.mubr.bf16.gmra.mxu0 %v646
  %v682 = vpop.f32.mrf.mxu0
  %v683 = vadd.f32 0.0, %v682
  %v684 = vpop.f32.mrf.mxu0
  %v685 = vadd.f32 0.0, %v684
  %v686 = vpop.f32.mrf.mxu0
  %v687 = vpop.f32.mrf.mxu0
  %688 = vdwg.mxu0
  %v689 = vadd.f32 %v137, %v683
  %v690 = vxor.u32 %v689, 2147483648
  %v691 = vmul.f32 %v690, 1.442695
  %v692 = vpow.pop %v691
  %v693 = vadd.f32 %v692, 1.0
  %v694 = vrcp.pop %v693
  %v695 = vmul.f32 1.0, %v694
  %v696 = vtanh.pop %v689
  %v697 = vmul.f32 %v695, %v603
  %699 = vrot.lane.b32.xlu0 %v696, 32
  %v700 = vpop.permute.xlu0 %699
  %v702 = vmul.f32 %v695, %v700
  %704 = vrot.lane.b32.xlu0 %v702, 32
  %v705 = vpop.permute.xlu0 %704
  %v707 = vadd.f32 %v697, %v705
  %v708 = vtanh.pop %v707
  %710 = vrot.lane.b32.xlu0 %v708, 32
  %v711 = vpop.permute.xlu0 %710
  %v713 = vmul.f32 %v695, %v711
  %v714 = vadd.f32 %v297, %v685
  %v715 = vxor.u32 %v714, 2147483648
  %v716 = vmul.f32 %v715, 1.442695
  %v717 = vpow.pop %v716
  %v718 = vadd.f32 %v717, 1.0
  %v719 = vrcp.pop %v718
  %v720 = vmul.f32 1.0, %v719
  %v721 = vtanh.pop %v714
  %v722 = vmul.f32 %v720, %v628
  %724 = vrot.lane.b32.xlu0 %v721, 32
  %v725 = vpop.permute.xlu0 %724
  %v727 = vmul.f32 %v720, %v725
  %729 = vrot.lane.b32.xlu0 %v727, 32
  %v730 = vpop.permute.xlu0 %729
  %v732 = vadd.f32 %v722, %v730
  %v733 = vtanh.pop %v732
  %735 = vrot.lane.b32.xlu0 %v733, 32
  %v736 = vpop.permute.xlu0 %735
  %v738 = vmul.f32 %v720, %v736
  %740 = vrot.lane.b32.xlu0 %v713, 64
  %v741 = vpop.permute.xlu0 %740
  %744 = vrot.lane.b32.xlu0 %v738, 96
  %v745 = vpop.permute.xlu0 %744
  %v747 = vsel %vm222, %v741, %v745
  %v748 = vpack.c.bf16 %v747, %v747
  %v750 = vsel %vm149, %v748, 0
  %752 = vmatprep.subr.bf16.mxu0 0
  %753 = vmatpush1.bf16.msra.mxu0 0
  %754 = vmatprep.subr.bf16.mxu0 0
  %755 = vmatpush1.bf16.msra.mxu0 0
  %756 = vmatprep.subr.bf16.mxu0 0
  %757 = vmatpush1.bf16.msra.mxu0 0
  %758 = vmatprep.subr.bf16.mxu0 0
  %759 = vmatpush1.bf16.msra.mxu0 0
  %760 = vmatprep.subr.bf16.mxu0 %v49
  %761 = vmatpush1.bf16.msra.mxu0 %v48
  %762 = vmatprep.subr.bf16.mxu0 %v47
  %763 = vmatpush1.bf16.msra.mxu0 %v46
  %764 = vmatprep.subr.bf16.mxu0 %v45
  %765 = vmatpush1.bf16.msra.mxu0 %v44
  %766 = vmatprep.subr.bf16.mxu0 %v43
  %767 = vmatpush1.bf16.msra.mxu0 %v42
  %768 = vmatprep.subr.bf16.mxu0 0
  %769 = vmatpush2.bf16.msra.mxu0 0
  %770 = vmatprep.subr.bf16.mxu0 0
  %771 = vmatpush2.bf16.msra.mxu0 0
  %772 = vmatprep.subr.bf16.mxu0 0
  %773 = vmatpush2.bf16.msra.mxu0 0
  %774 = vmatprep.subr.bf16.mxu0 0
  %775 = vmatpush2.bf16.msra.mxu0 0
  %776 = vmatprep.subr.bf16.mxu0 0
  %777 = vmatpush2.bf16.msra.mxu0 0
  %778 = vmatprep.subr.bf16.mxu0 0
  %779 = vmatpush2.bf16.msra.mxu0 0
  %780 = vmatprep.subr.bf16.mxu0 0
  %781 = vmatpush2.bf16.msra.mxu0 0
  %782 = vmatprep.subr.bf16.mxu0 0
  %783 = vmatpush2.bf16.msra.mxu0 0
  %784 = vmatprep.mubr.bf16.mxu0 0
  %785 = vmatmul.mubr.bf16.gmra.mxu0 %v750
  %v786 = vpop.f32.mrf.mxu0
  %v787 = vadd.f32 0.0, %v786
  %v788 = vpop.f32.mrf.mxu0
  %v789 = vadd.f32 0.0, %v788
  %v790 = vpop.f32.mrf.mxu0
  %v791 = vpop.f32.mrf.mxu0
  %792 = vdwg.mxu0
  %v793 = vadd.f32 %v142, %v787
  %v794 = vxor.u32 %v793, 2147483648
  %v795 = vmul.f32 %v794, 1.442695
  %v796 = vpow.pop %v795
  %v797 = vadd.f32 %v796, 1.0
  %v798 = vrcp.pop %v797
  %v799 = vmul.f32 1.0, %v798
  %v800 = vtanh.pop %v793
  %v801 = vmul.f32 %v799, %v707
  %803 = vrot.lane.b32.xlu0 %v800, 32
  %v804 = vpop.permute.xlu0 %803
  %v806 = vmul.f32 %v799, %v804
  %808 = vrot.lane.b32.xlu0 %v806, 32
  %v809 = vpop.permute.xlu0 %808
  %v811 = vadd.f32 %v801, %v809
  %v812 = vtanh.pop %v811
  %814 = vrot.lane.b32.xlu0 %v812, 32
  %v815 = vpop.permute.xlu0 %814
  %v817 = vmul.f32 %v799, %v815
  %v818 = vadd.f32 %v297, %v789
  %v819 = vxor.u32 %v818, 2147483648
  %v820 = vmul.f32 %v819, 1.442695
  %v821 = vpow.pop %v820
  %v822 = vadd.f32 %v821, 1.0
  %v823 = vrcp.pop %v822
  %v824 = vmul.f32 1.0, %v823
  %v825 = vtanh.pop %v818
  %v826 = vmul.f32 %v824, %v732
  %828 = vrot.lane.b32.xlu0 %v825, 32
  %v829 = vpop.permute.xlu0 %828
  %v831 = vmul.f32 %v824, %v829
  %833 = vrot.lane.b32.xlu0 %v831, 32
  %v834 = vpop.permute.xlu0 %833
  %v836 = vadd.f32 %v826, %v834
  %v837 = vtanh.pop %v836
  %839 = vrot.lane.b32.xlu0 %v837, 32
  %v840 = vpop.permute.xlu0 %839
  %v842 = vmul.f32 %v824, %v840
  %844 = vrot.lane.b32.xlu0 %v817, 64
  %v845 = vpop.permute.xlu0 %844
  %848 = vrot.lane.b32.xlu0 %v842, 96
  %v849 = vpop.permute.xlu0 %848
  %v851 = vsel %vm222, %v845, %v849
  %v852 = vpack.c.bf16 %v851, %v851
  %v854 = vsel %vm149, %v852, 0
  %856 = vmatprep.subr.bf16.mxu0 0
  %857 = vmatpush1.bf16.msra.mxu0 0
  %858 = vmatprep.subr.bf16.mxu0 0
  %859 = vmatpush1.bf16.msra.mxu0 0
  %860 = vmatprep.subr.bf16.mxu0 0
  %861 = vmatpush1.bf16.msra.mxu0 0
  %862 = vmatprep.subr.bf16.mxu0 0
  %863 = vmatpush1.bf16.msra.mxu0 0
  %864 = vmatprep.subr.bf16.mxu0 %v49
  %865 = vmatpush1.bf16.msra.mxu0 %v48
  %866 = vmatprep.subr.bf16.mxu0 %v47
  %867 = vmatpush1.bf16.msra.mxu0 %v46
  %868 = vmatprep.subr.bf16.mxu0 %v45
  %869 = vmatpush1.bf16.msra.mxu0 %v44
  %870 = vmatprep.subr.bf16.mxu0 %v43
  %871 = vmatpush1.bf16.msra.mxu0 %v42
  %872 = vmatprep.subr.bf16.mxu0 0
  %873 = vmatpush2.bf16.msra.mxu0 0
  %874 = vmatprep.subr.bf16.mxu0 0
  %875 = vmatpush2.bf16.msra.mxu0 0
  %876 = vmatprep.subr.bf16.mxu0 0
  %877 = vmatpush2.bf16.msra.mxu0 0
  %878 = vmatprep.subr.bf16.mxu0 0
  %879 = vmatpush2.bf16.msra.mxu0 0
  %880 = vmatprep.subr.bf16.mxu0 0
  %881 = vmatpush2.bf16.msra.mxu0 0
  %882 = vmatprep.subr.bf16.mxu0 0
  %883 = vmatpush2.bf16.msra.mxu0 0
  %884 = vmatprep.subr.bf16.mxu0 0
  %885 = vmatpush2.bf16.msra.mxu0 0
  %886 = vmatprep.subr.bf16.mxu0 0
  %887 = vmatpush2.bf16.msra.mxu0 0
  %888 = vmatprep.mubr.bf16.mxu0 0
  %889 = vmatmul.mubr.bf16.gmra.mxu0 %v854
  %v890 = vpop.f32.mrf.mxu0
  %v891 = vadd.f32 0.0, %v890
  %v892 = vpop.f32.mrf.mxu0
  %v893 = vadd.f32 0.0, %v892
  %v894 = vpop.f32.mrf.mxu0
  %v895 = vpop.f32.mrf.mxu0
  %896 = vdwg.mxu0
  %v897 = vadd.f32 %v145, %v891
  %v898 = vxor.u32 %v897, 2147483648
  %v899 = vmul.f32 %v898, 1.442695
  %v900 = vpow.pop %v899
  %v901 = vadd.f32 %v900, 1.0
  %v902 = vrcp.pop %v901
  %v903 = vmul.f32 1.0, %v902
  %v904 = vtanh.pop %v897
  %v905 = vmul.f32 %v903, %v811
  %907 = vrot.lane.b32.xlu0 %v904, 32
  %v908 = vpop.permute.xlu0 %907
  %v910 = vmul.f32 %v903, %v908
  %912 = vrot.lane.b32.xlu0 %v910, 32
  %v913 = vpop.permute.xlu0 %912
  %v915 = vadd.f32 %v905, %v913
  %v916 = vtanh.pop %v915
  %918 = vrot.lane.b32.xlu0 %v916, 32
  %v919 = vpop.permute.xlu0 %918
  %v921 = vmul.f32 %v903, %v919
  %v922 = vadd.f32 %v297, %v893
  %v923 = vxor.u32 %v922, 2147483648
  %v924 = vmul.f32 %v923, 1.442695
  %v925 = vpow.pop %v924
  %v926 = vadd.f32 %v925, 1.0
  %v927 = vrcp.pop %v926
  %v928 = vmul.f32 1.0, %v927
  %v929 = vtanh.pop %v922
  %v930 = vmul.f32 %v928, %v836
  %932 = vrot.lane.b32.xlu0 %v929, 32
  %v933 = vpop.permute.xlu0 %932
  %v935 = vmul.f32 %v928, %v933
  %937 = vrot.lane.b32.xlu0 %v935, 32
  %v938 = vpop.permute.xlu0 %937
  %v940 = vadd.f32 %v930, %v938
  %v941 = vtanh.pop %v940
  %943 = vrot.lane.b32.xlu0 %v941, 32
  %v944 = vpop.permute.xlu0 %943
  %v946 = vmul.f32 %v928, %v944
  %948 = vrot.lane.b32.xlu0 %v921, 64
  %v949 = vpop.permute.xlu0 %948
  %952 = vrot.lane.b32.xlu0 %v946, 96
  %v953 = vpop.permute.xlu0 %952
  %v955 = vsel %vm222, %v949, %v953
  %v956 = vpack.c.bf16 %v955, %v955
  %v958 = vsel %vm149, %v956, 0
  %960 = vmatprep.subr.bf16.mxu0 0
  %961 = vmatpush1.bf16.msra.mxu0 0
  %962 = vmatprep.subr.bf16.mxu0 0
  %963 = vmatpush1.bf16.msra.mxu0 0
  %964 = vmatprep.subr.bf16.mxu0 0
  %965 = vmatpush1.bf16.msra.mxu0 0
  %966 = vmatprep.subr.bf16.mxu0 0
  %967 = vmatpush1.bf16.msra.mxu0 0
  %968 = vmatprep.subr.bf16.mxu0 %v49
  %969 = vmatpush1.bf16.msra.mxu0 %v48
  %970 = vmatprep.subr.bf16.mxu0 %v47
  %971 = vmatpush1.bf16.msra.mxu0 %v46
  %972 = vmatprep.subr.bf16.mxu0 %v45
  %973 = vmatpush1.bf16.msra.mxu0 %v44
  %974 = vmatprep.subr.bf16.mxu0 %v43
  %975 = vmatpush1.bf16.msra.mxu0 %v42
  %976 = vmatprep.subr.bf16.mxu0 0
  %977 = vmatpush2.bf16.msra.mxu0 0
  %978 = vmatprep.subr.bf16.mxu0 0
  %979 = vmatpush2.bf16.msra.mxu0 0
  %980 = vmatprep.subr.bf16.mxu0 0
  %981 = vmatpush2.bf16.msra.mxu0 0
  %982 = vmatprep.subr.bf16.mxu0 0
  %983 = vmatpush2.bf16.msra.mxu0 0
  %984 = vmatprep.subr.bf16.mxu0 0
  %985 = vmatpush2.bf16.msra.mxu0 0
  %986 = vmatprep.subr.bf16.mxu0 0
  %987 = vmatpush2.bf16.msra.mxu0 0
  %988 = vmatprep.subr.bf16.mxu0 0
  %989 = vmatpush2.bf16.msra.mxu0 0
  %990 = vmatprep.subr.bf16.mxu0 0
  %991 = vmatpush2.bf16.msra.mxu0 0
  %992 = vmatprep.mubr.bf16.mxu0 0
  %993 = vmatmul.mubr.bf16.gmra.mxu0 %v958
  %v994 = vpop.f32.mrf.mxu0
  %v995 = vpop.f32.mrf.mxu0
  %v996 = vadd.f32 0.0, %v995
  %v997 = vpop.f32.mrf.mxu0
  %v998 = vpop.f32.mrf.mxu0
  %999 = vdwg.mxu0
  %v1000 = vadd.f32 %v297, %v996
  %v1001 = vxor.u32 %v1000, 2147483648
  %v1002 = vmul.f32 %v1001, 1.442695
  %v1003 = vpow.pop %v1002
  %v1004 = vadd.f32 %v1003, 1.0
  %v1005 = vrcp.pop %v1004
  %v1006 = vmul.f32 1.0, %v1005
  %v1007 = vtanh.pop %v1000
  %v1008 = vmul.f32 %v1006, %v940
  %1010 = vrot.lane.b32.xlu0 %v1007, 32
  %v1011 = vpop.permute.xlu0 %1010
  %v1013 = vmul.f32 %v1006, %v1011
  %1015 = vrot.lane.b32.xlu0 %v1013, 32
  %v1016 = vpop.permute.xlu0 %1015
  %v1018 = vadd.f32 %v1008, %v1016
  %v1019 = vtanh.pop %v1018
  %1021 = vrot.lane.b32.xlu0 %v1019, 32
  %v1022 = vpop.permute.xlu0 %1021
  %v1024 = vmul.f32 %v1006, %v1022
  %v1025 = vld [vmem:[%s4] sm:$0xff]
  %v1026 = vld [vmem:[%s4 + $0x8] sm:$0xff]
  %v1027 = vld [vmem:[%s4 + $0x10] sm:$0xff]
  %v1028 = vld [vmem:[%s4 + $0x18] sm:$0xff]
  %v1029 = vld [vmem:[#allocation2] sm:$0x1]
  %v1031 = vlaneseq
  %v1032 = vshrl.u32 %v1031, 7
  %v1033 = vsub.s32 0, %v1032
  %v1034 = vrot.slane %v1029, %v1033
  %1037 = vrot.lane.b32.xlu0 %v1024, 64
  %v1038 = vpop.permute.xlu0 %1037
  %v1039 = vsel %vm222, %v1038, 0
  %1041 = vmatprep.subr.mxu0 0.0
  %1042 = vmatpush1.msra.mxu0 0.0
  %1043 = vmatprep.subr.mxu0 0.0
  %1044 = vmatpush1.msra.mxu0 0.0
  %1045 = vmatprep.subr.mxu0 0.0
  %1046 = vmatpush1.msra.mxu0 0.0
  %1047 = vmatprep.subr.mxu0 0.0
  %1048 = vmatpush1.msra.mxu0 0.0
  %1049 = vmatprep.subr.mxu0 0.0
  %1050 = vmatpush1.msra.mxu0 0.0
  %1051 = vmatprep.subr.mxu0 0.0
  %1052 = vmatpush1.msra.mxu0 0.0
  %1053 = vmatprep.subr.mxu0 0.0
  %1054 = vmatpush1.msra.mxu0 0.0
  %1055 = vmatprep.subr.mxu0 0.0
  %1056 = vmatpush1.msra.mxu0 0.0
  %1057 = vmatprep.subr.mxu0 0.0
  %1058 = vmatpush1.msra.mxu0 0.0
  %1059 = vmatprep.subr.mxu0 0.0
  %1060 = vmatpush1.msra.mxu0 0.0
  %1061 = vmatprep.subr.mxu0 0.0
  %1062 = vmatpush1.msra.mxu0 0.0
  %1063 = vmatprep.subr.mxu0 0.0
  %1064 = vmatpush1.msra.mxu0 0.0
  %1065 = vmatprep.subr.mxu0 0.0
  %v1066 = vand.u32 %v1028, 4294901760
  %1067 = vmatpush1.msra.mxu0 %v1066
  %1068 = vmatprep.subr.mxu0 0.0
  %v1069 = vand.u32 %v1027, 4294901760
  %1070 = vmatpush1.msra.mxu0 %v1069
  %1071 = vmatprep.subr.mxu0 0.0
  %v1072 = vand.u32 %v1026, 4294901760
  %1073 = vmatpush1.msra.mxu0 %v1072
  %1074 = vmatprep.subr.mxu0 0.0
  %v1075 = vand.u32 %v1025, 4294901760
  %1076 = vmatpush1.msra.mxu0 %v1075
  %1077 = vmatprep.subr.mxu0 0.0
  %1078 = vmatpush2.msra.mxu0 0.0
  %1079 = vmatprep.subr.mxu0 0.0
  %1080 = vmatpush2.msra.mxu0 0.0
  %1081 = vmatprep.subr.mxu0 0.0
  %1082 = vmatpush2.msra.mxu0 0.0
  %1083 = vmatprep.subr.mxu0 0.0
  %1084 = vmatpush2.msra.mxu0 0.0
  %1085 = vmatprep.subr.mxu0 0.0
  %1086 = vmatpush2.msra.mxu0 0.0
  %1087 = vmatprep.subr.mxu0 0.0
  %1088 = vmatpush2.msra.mxu0 0.0
  %1089 = vmatprep.subr.mxu0 0.0
  %1090 = vmatpush2.msra.mxu0 0.0
  %1091 = vmatprep.subr.mxu0 0.0
  %1092 = vmatpush2.msra.mxu0 0.0
  %1093 = vmatprep.subr.mxu0 0.0
  %1094 = vmatpush2.msra.mxu0 0.0
  %1095 = vmatprep.subr.mxu0 0.0
  %1096 = vmatpush2.msra.mxu0 0.0
  %1097 = vmatprep.subr.mxu0 0.0
  %1098 = vmatpush2.msra.mxu0 0.0
  %1099 = vmatprep.subr.mxu0 0.0
  %1100 = vmatpush2.msra.mxu0 0.0
  %1101 = vmatprep.subr.mxu0 0.0
  %1102 = vmatpush2.msra.mxu0 0.0
  %1103 = vmatprep.subr.mxu0 0.0
  %1104 = vmatpush2.msra.mxu0 0.0
  %1105 = vmatprep.subr.mxu0 0.0
  %1106 = vmatpush2.msra.mxu0 0.0
  %1107 = vmatprep.subr.mxu0 0.0
  %1108 = vmatpush2.msra.mxu0 0.0
  %1109 = vmatprep.mubr.f32.mxu0 0.0
  %v1110 = vand.u32 %v1039, 4294901760
  %v1111 = vsub.f32 %v1039, %v1110
  %v1112 = vand.u32 %v1111, 4294901760
  %v1113 = vsub.f32 %v1111, %v1112
  %v1114 = vand.u32 %v1113, 4294901760
  %1115 = vmatmul.mubr.f32.gmra.mxu0 %v1114
  %v1116 = vpop.f32.mrf.mxu0
  %v1117 = vadd.f32 %v1034, %v1116
  %v1118 = vpop.f32.mrf.mxu0
  %1119 = vdwg.mxu0
  %1120 = vmatprep.subr.mxu0 0.0
  %1121 = vmatpush1.msra.mxu0 0.0
  %1122 = vmatprep.subr.mxu0 0.0
  %1123 = vmatpush1.msra.mxu0 0.0
  %1124 = vmatprep.subr.mxu0 0.0
  %1125 = vmatpush1.msra.mxu0 0.0
  %1126 = vmatprep.subr.mxu0 0.0
  %1127 = vmatpush1.msra.mxu0 0.0
  %1128 = vmatprep.subr.mxu0 0.0
  %1129 = vmatpush1.msra.mxu0 0.0
  %1130 = vmatprep.subr.mxu0 0.0
  %1131 = vmatpush1.msra.mxu0 0.0
  %1132 = vmatprep.subr.mxu0 0.0
  %1133 = vmatpush1.msra.mxu0 0.0
  %1134 = vmatprep.subr.mxu0 0.0
  %1135 = vmatpush1.msra.mxu0 0.0
  %1136 = vmatprep.subr.mxu0 0.0
  %1137 = vmatpush1.msra.mxu0 0.0
  %1138 = vmatprep.subr.mxu0 0.0
  %1139 = vmatpush1.msra.mxu0 0.0
  %1140 = vmatprep.subr.mxu0 0.0
  %1141 = vmatpush1.msra.mxu0 0.0
  %1142 = vmatprep.subr.mxu0 0.0
  %1143 = vmatpush1.msra.mxu0 0.0
  %1144 = vmatprep.subr.mxu0 0.0
  %v1145 = vand.u32 %v1028, 4294901760
  %v1146 = vsub.f32 %v1028, %v1145
  %v1147 = vand.u32 %v1146, 4294901760
  %v1148 = vsub.f32 %v1146, %v1147
  %v1149 = vand.u32 %v1148, 4294901760
  %1150 = vmatpush1.msra.mxu0 %v1149
  %1151 = vmatprep.subr.mxu0 0.0
  %v1152 = vand.u32 %v1027, 4294901760
  %v1153 = vsub.f32 %v1027, %v1152
  %v1154 = vand.u32 %v1153, 4294901760
  %v1155 = vsub.f32 %v1153, %v1154
  %v1156 = vand.u32 %v1155, 4294901760
  %1157 = vmatpush1.msra.mxu0 %v1156
  %1158 = vmatprep.subr.mxu0 0.0
  %v1159 = vand.u32 %v1026, 4294901760
  %v1160 = vsub.f32 %v1026, %v1159
  %v1161 = vand.u32 %v1160, 4294901760
  %v1162 = vsub.f32 %v1160, %v1161
  %v1163 = vand.u32 %v1162, 4294901760
  %1164 = vmatpush1.msra.mxu0 %v1163
  %1165 = vmatprep.subr.mxu0 0.0
  %v1166 = vand.u32 %v1025, 4294901760
  %v1167 = vsub.f32 %v1025, %v1166
  %v1168 = vand.u32 %v1167, 4294901760
  %v1169 = vsub.f32 %v1167, %v1168
  %v1170 = vand.u32 %v1169, 4294901760
  %1171 = vmatpush1.msra.mxu0 %v1170
  %1172 = vmatprep.subr.mxu0 0.0
  %1173 = vmatpush2.msra.mxu0 0.0
  %1174 = vmatprep.subr.mxu0 0.0
  %1175 = vmatpush2.msra.mxu0 0.0
  %1176 = vmatprep.subr.mxu0 0.0
  %1177 = vmatpush2.msra.mxu0 0.0
  %1178 = vmatprep.subr.mxu0 0.0
  %1179 = vmatpush2.msra.mxu0 0.0
  %1180 = vmatprep.subr.mxu0 0.0
  %1181 = vmatpush2.msra.mxu0 0.0
  %1182 = vmatprep.subr.mxu0 0.0
  %1183 = vmatpush2.msra.mxu0 0.0
  %1184 = vmatprep.subr.mxu0 0.0
  %1185 = vmatpush2.msra.mxu0 0.0
  %1186 = vmatprep.subr.mxu0 0.0
  %1187 = vmatpush2.msra.mxu0 0.0
  %1188 = vmatprep.subr.mxu0 0.0
  %1189 = vmatpush2.msra.mxu0 0.0
  %1190 = vmatprep.subr.mxu0 0.0
  %1191 = vmatpush2.msra.mxu0 0.0
  %1192 = vmatprep.subr.mxu0 0.0
  %1193 = vmatpush2.msra.mxu0 0.0
  %1194 = vmatprep.subr.mxu0 0.0
  %1195 = vmatpush2.msra.mxu0 0.0
  %1196 = vmatprep.subr.mxu0 0.0
  %1197 = vmatpush2.msra.mxu0 0.0
  %1198 = vmatprep.subr.mxu0 0.0
  %1199 = vmatpush2.msra.mxu0 0.0
  %1200 = vmatprep.subr.mxu0 0.0
  %1201 = vmatpush2.msra.mxu0 0.0
  %1202 = vmatprep.subr.mxu0 0.0
  %1203 = vmatpush2.msra.mxu0 0.0
  %1204 = vmatprep.mubr.f32.mxu0 0.0
  %v1205 = vand.u32 %v1039, 4294901760
  %1206 = vmatmul.mubr.f32.gmra.mxu0 %v1205
  %v1207 = vpop.f32.mrf.mxu0
  %v1208 = vadd.f32 %v1117, %v1207
  %v1209 = vpop.f32.mrf.mxu0
  %1210 = vdwg.mxu0
  %1211 = vmatprep.subr.mxu0 0.0
  %1212 = vmatpush1.msra.mxu0 0.0
  %1213 = vmatprep.subr.mxu0 0.0
  %1214 = vmatpush1.msra.mxu0 0.0
  %1215 = vmatprep.subr.mxu0 0.0
  %1216 = vmatpush1.msra.mxu0 0.0
  %1217 = vmatprep.subr.mxu0 0.0
  %1218 = vmatpush1.msra.mxu0 0.0
  %1219 = vmatprep.subr.mxu0 0.0
  %1220 = vmatpush1.msra.mxu0 0.0
  %1221 = vmatprep.subr.mxu0 0.0
  %1222 = vmatpush1.msra.mxu0 0.0
  %1223 = vmatprep.subr.mxu0 0.0
  %1224 = vmatpush1.msra.mxu0 0.0
  %1225 = vmatprep.subr.mxu0 0.0
  %1226 = vmatpush1.msra.mxu0 0.0
  %1227 = vmatprep.subr.mxu0 0.0
  %1228 = vmatpush1.msra.mxu0 0.0
  %1229 = vmatprep.subr.mxu0 0.0
  %1230 = vmatpush1.msra.mxu0 0.0
  %1231 = vmatprep.subr.mxu0 0.0
  %1232 = vmatpush1.msra.mxu0 0.0
  %1233 = vmatprep.subr.mxu0 0.0
  %1234 = vmatpush1.msra.mxu0 0.0
  %1235 = vmatprep.subr.mxu0 0.0
  %v1236 = vand.u32 %v1028, 4294901760
  %v1237 = vsub.f32 %v1028, %v1236
  %1238 = vmatpush1.msra.mxu0 %v1237
  %1239 = vmatprep.subr.mxu0 0.0
  %v1240 = vand.u32 %v1027, 4294901760
  %v1241 = vsub.f32 %v1027, %v1240
  %1242 = vmatpush1.msra.mxu0 %v1241
  %1243 = vmatprep.subr.mxu0 0.0
  %v1244 = vand.u32 %v1026, 4294901760
  %v1245 = vsub.f32 %v1026, %v1244
  %1246 = vmatpush1.msra.mxu0 %v1245
  %1247 = vmatprep.subr.mxu0 0.0
  %v1248 = vand.u32 %v1025, 4294901760
  %v1249 = vsub.f32 %v1025, %v1248
  %1250 = vmatpush1.msra.mxu0 %v1249
  %1251 = vmatprep.subr.mxu0 0.0
  %1252 = vmatpush2.msra.mxu0 0.0
  %1253 = vmatprep.subr.mxu0 0.0
  %1254 = vmatpush2.msra.mxu0 0.0
  %1255 = vmatprep.subr.mxu0 0.0
  %1256 = vmatpush2.msra.mxu0 0.0
  %1257 = vmatprep.subr.mxu0 0.0
  %1258 = vmatpush2.msra.mxu0 0.0
  %1259 = vmatprep.subr.mxu0 0.0
  %1260 = vmatpush2.msra.mxu0 0.0
  %1261 = vmatprep.subr.mxu0 0.0
  %1262 = vmatpush2.msra.mxu0 0.0
  %1263 = vmatprep.subr.mxu0 0.0
  %1264 = vmatpush2.msra.mxu0 0.0
  %1265 = vmatprep.subr.mxu0 0.0
  %1266 = vmatpush2.msra.mxu0 0.0
  %1267 = vmatprep.subr.mxu0 0.0
  %1268 = vmatpush2.msra.mxu0 0.0
  %1269 = vmatprep.subr.mxu0 0.0
  %1270 = vmatpush2.msra.mxu0 0.0
  %1271 = vmatprep.subr.mxu0 0.0
  %1272 = vmatpush2.msra.mxu0 0.0
  %1273 = vmatprep.subr.mxu0 0.0
  %1274 = vmatpush2.msra.mxu0 0.0
  %1275 = vmatprep.subr.mxu0 0.0
  %1276 = vmatpush2.msra.mxu0 0.0
  %1277 = vmatprep.subr.mxu0 0.0
  %1278 = vmatpush2.msra.mxu0 0.0
  %1279 = vmatprep.subr.mxu0 0.0
  %1280 = vmatpush2.msra.mxu0 0.0
  %1281 = vmatprep.subr.mxu0 0.0
  %1282 = vmatpush2.msra.mxu0 0.0
  %1283 = vmatprep.mubr.f32.mxu0 0.0
  %v1284 = vand.u32 %v1039, 4294901760
  %v1285 = vsub.f32 %v1039, %v1284
  %1286 = vmatmul.mubr.f32.gmra.mxu0 %v1285
  %v1287 = vpop.f32.mrf.mxu0
  %v1288 = vadd.f32 %v1208, %v1287
  %v1289 = vpop.f32.mrf.mxu0
  %1290 = vdwg.mxu0
  %1291 = vmatprep.subr.mxu0 0.0
  %1292 = vmatpush1.msra.mxu0 0.0
  %1293 = vmatprep.subr.mxu0 0.0
  %1294 = vmatpush1.msra.mxu0 0.0
  %1295 = vmatprep.subr.mxu0 0.0
  %1296 = vmatpush1.msra.mxu0 0.0
  %1297 = vmatprep.subr.mxu0 0.0
  %1298 = vmatpush1.msra.mxu0 0.0
  %1299 = vmatprep.subr.mxu0 0.0
  %1300 = vmatpush1.msra.mxu0 0.0
  %1301 = vmatprep.subr.mxu0 0.0
  %1302 = vmatpush1.msra.mxu0 0.0
  %1303 = vmatprep.subr.mxu0 0.0
  %1304 = vmatpush1.msra.mxu0 0.0
  %1305 = vmatprep.subr.mxu0 0.0
  %1306 = vmatpush1.msra.mxu0 0.0
  %1307 = vmatprep.subr.mxu0 0.0
  %1308 = vmatpush1.msra.mxu0 0.0
  %1309 = vmatprep.subr.mxu0 0.0
  %1310 = vmatpush1.msra.mxu0 0.0
  %1311 = vmatprep.subr.mxu0 0.0
  %1312 = vmatpush1.msra.mxu0 0.0
  %1313 = vmatprep.subr.mxu0 0.0
  %1314 = vmatpush1.msra.mxu0 0.0
  %1315 = vmatprep.subr.mxu0 0.0
  %v1316 = vand.u32 %v1028, 4294901760
  %1317 = vmatpush1.msra.mxu0 %v1316
  %1318 = vmatprep.subr.mxu0 0.0
  %v1319 = vand.u32 %v1027, 4294901760
  %1320 = vmatpush1.msra.mxu0 %v1319
  %1321 = vmatprep.subr.mxu0 0.0
  %v1322 = vand.u32 %v1026, 4294901760
  %1323 = vmatpush1.msra.mxu0 %v1322
  %1324 = vmatprep.subr.mxu0 0.0
  %v1325 = vand.u32 %v1025, 4294901760
  %1326 = vmatpush1.msra.mxu0 %v1325
  %1327 = vmatprep.subr.mxu0 0.0
  %1328 = vmatpush2.msra.mxu0 0.0
  %1329 = vmatprep.subr.mxu0 0.0
  %1330 = vmatpush2.msra.mxu0 0.0
  %1331 = vmatprep.subr.mxu0 0.0
  %1332 = vmatpush2.msra.mxu0 0.0
  %1333 = vmatprep.subr.mxu0 0.0
  %1334 = vmatpush2.msra.mxu0 0.0
  %1335 = vmatprep.subr.mxu0 0.0
  %1336 = vmatpush2.msra.mxu0 0.0
  %1337 = vmatprep.subr.mxu0 0.0
  %1338 = vmatpush2.msra.mxu0 0.0
  %1339 = vmatprep.subr.mxu0 0.0
  %1340 = vmatpush2.msra.mxu0 0.0
  %1341 = vmatprep.subr.mxu0 0.0
  %1342 = vmatpush2.msra.mxu0 0.0
  %1343 = vmatprep.subr.mxu0 0.0
  %1344 = vmatpush2.msra.mxu0 0.0
  %1345 = vmatprep.subr.mxu0 0.0
  %1346 = vmatpush2.msra.mxu0 0.0
  %1347 = vmatprep.subr.mxu0 0.0
  %1348 = vmatpush2.msra.mxu0 0.0
  %1349 = vmatprep.subr.mxu0 0.0
  %1350 = vmatpush2.msra.mxu0 0.0
  %1351 = vmatprep.subr.mxu0 0.0
  %1352 = vmatpush2.msra.mxu0 0.0
  %1353 = vmatprep.subr.mxu0 0.0
  %1354 = vmatpush2.msra.mxu0 0.0
  %1355 = vmatprep.subr.mxu0 0.0
  %1356 = vmatpush2.msra.mxu0 0.0
  %1357 = vmatprep.subr.mxu0 0.0
  %1358 = vmatpush2.msra.mxu0 0.0
  %1359 = vmatprep.mubr.f32.mxu0 0.0
  %v1360 = vand.u32 %v1039, 4294901760
  %v1361 = vsub.f32 %v1039, %v1360
  %v1362 = vand.u32 %v1361, 4294901760
  %1363 = vmatmul.mubr.f32.gmra.mxu0 %v1362
  %v1364 = vpop.f32.mrf.mxu0
  %v1365 = vadd.f32 %v1288, %v1364
  %v1366 = vpop.f32.mrf.mxu0
  %1367 = vdwg.mxu0
  %1368 = vmatprep.subr.mxu0 0.0
  %1369 = vmatpush1.msra.mxu0 0.0
  %1370 = vmatprep.subr.mxu0 0.0
  %1371 = vmatpush1.msra.mxu0 0.0
  %1372 = vmatprep.subr.mxu0 0.0
  %1373 = vmatpush1.msra.mxu0 0.0
  %1374 = vmatprep.subr.mxu0 0.0
  %1375 = vmatpush1.msra.mxu0 0.0
  %1376 = vmatprep.subr.mxu0 0.0
  %1377 = vmatpush1.msra.mxu0 0.0
  %1378 = vmatprep.subr.mxu0 0.0
  %1379 = vmatpush1.msra.mxu0 0.0
  %1380 = vmatprep.subr.mxu0 0.0
  %1381 = vmatpush1.msra.mxu0 0.0
  %1382 = vmatprep.subr.mxu0 0.0
  %1383 = vmatpush1.msra.mxu0 0.0
  %1384 = vmatprep.subr.mxu0 0.0
  %1385 = vmatpush1.msra.mxu0 0.0
  %1386 = vmatprep.subr.mxu0 0.0
  %1387 = vmatpush1.msra.mxu0 0.0
  %1388 = vmatprep.subr.mxu0 0.0
  %1389 = vmatpush1.msra.mxu0 0.0
  %1390 = vmatprep.subr.mxu0 0.0
  %1391 = vmatpush1.msra.mxu0 0.0
  %1392 = vmatprep.subr.mxu0 0.0
  %v1393 = vand.u32 %v1028, 4294901760
  %v1394 = vsub.f32 %v1028, %v1393
  %v1395 = vand.u32 %v1394, 4294901760
  %1396 = vmatpush1.msra.mxu0 %v1395
  %1397 = vmatprep.subr.mxu0 0.0
  %v1398 = vand.u32 %v1027, 4294901760
  %v1399 = vsub.f32 %v1027, %v1398
  %v1400 = vand.u32 %v1399, 4294901760
  %1401 = vmatpush1.msra.mxu0 %v1400
  %1402 = vmatprep.subr.mxu0 0.0
  %v1403 = vand.u32 %v1026, 4294901760
  %v1404 = vsub.f32 %v1026, %v1403
  %v1405 = vand.u32 %v1404, 4294901760
  %1406 = vmatpush1.msra.mxu0 %v1405
  %1407 = vmatprep.subr.mxu0 0.0
  %v1408 = vand.u32 %v1025, 4294901760
  %v1409 = vsub.f32 %v1025, %v1408
  %v1410 = vand.u32 %v1409, 4294901760
  %1411 = vmatpush1.msra.mxu0 %v1410
  %1412 = vmatprep.subr.mxu0 0.0
  %1413 = vmatpush2.msra.mxu0 0.0
  %1414 = vmatprep.subr.mxu0 0.0
  %1415 = vmatpush2.msra.mxu0 0.0
  %1416 = vmatprep.subr.mxu0 0.0
  %1417 = vmatpush2.msra.mxu0 0.0
  %1418 = vmatprep.subr.mxu0 0.0
  %1419 = vmatpush2.msra.mxu0 0.0
  %1420 = vmatprep.subr.mxu0 0.0
  %1421 = vmatpush2.msra.mxu0 0.0
  %1422 = vmatprep.subr.mxu0 0.0
  %1423 = vmatpush2.msra.mxu0 0.0
  %1424 = vmatprep.subr.mxu0 0.0
  %1425 = vmatpush2.msra.mxu0 0.0
  %1426 = vmatprep.subr.mxu0 0.0
  %1427 = vmatpush2.msra.mxu0 0.0
  %1428 = vmatprep.subr.mxu0 0.0
  %1429 = vmatpush2.msra.mxu0 0.0
  %1430 = vmatprep.subr.mxu0 0.0
  %1431 = vmatpush2.msra.mxu0 0.0
  %1432 = vmatprep.subr.mxu0 0.0
  %1433 = vmatpush2.msra.mxu0 0.0
  %1434 = vmatprep.subr.mxu0 0.0
  %1435 = vmatpush2.msra.mxu0 0.0
  %1436 = vmatprep.subr.mxu0 0.0
  %1437 = vmatpush2.msra.mxu0 0.0
  %1438 = vmatprep.subr.mxu0 0.0
  %1439 = vmatpush2.msra.mxu0 0.0
  %1440 = vmatprep.subr.mxu0 0.0
  %1441 = vmatpush2.msra.mxu0 0.0
  %1442 = vmatprep.subr.mxu0 0.0
  %1443 = vmatpush2.msra.mxu0 0.0
  %1444 = vmatprep.mubr.f32.mxu0 0.0
  %v1445 = vand.u32 %v1039, 4294901760
  %1446 = vmatmul.mubr.f32.gmra.mxu0 %v1445
  %v1447 = vpop.f32.mrf.mxu0
  %v1448 = vadd.f32 %v1365, %v1447
  %v1449 = vpop.f32.mrf.mxu0
  %1450 = vdwg.mxu0
  %1451 = vmatprep.subr.mxu0 0.0
  %1452 = vmatpush1.msra.mxu0 0.0
  %1453 = vmatprep.subr.mxu0 0.0
  %1454 = vmatpush1.msra.mxu0 0.0
  %1455 = vmatprep.subr.mxu0 0.0
  %1456 = vmatpush1.msra.mxu0 0.0
  %1457 = vmatprep.subr.mxu0 0.0
  %1458 = vmatpush1.msra.mxu0 0.0
  %1459 = vmatprep.subr.mxu0 0.0
  %1460 = vmatpush1.msra.mxu0 0.0
  %1461 = vmatprep.subr.mxu0 0.0
  %1462 = vmatpush1.msra.mxu0 0.0
  %1463 = vmatprep.subr.mxu0 0.0
  %1464 = vmatpush1.msra.mxu0 0.0
  %1465 = vmatprep.subr.mxu0 0.0
  %1466 = vmatpush1.msra.mxu0 0.0
  %1467 = vmatprep.subr.mxu0 0.0
  %1468 = vmatpush1.msra.mxu0 0.0
  %1469 = vmatprep.subr.mxu0 0.0
  %1470 = vmatpush1.msra.mxu0 0.0
  %1471 = vmatprep.subr.mxu0 0.0
  %1472 = vmatpush1.msra.mxu0 0.0
  %1473 = vmatprep.subr.mxu0 0.0
  %1474 = vmatpush1.msra.mxu0 0.0
  %1475 = vmatprep.subr.mxu0 0.0
  %v1476 = vand.u32 %v1028, 4294901760
  %1477 = vmatpush1.msra.mxu0 %v1476
  %1478 = vmatprep.subr.mxu0 0.0
  %v1479 = vand.u32 %v1027, 4294901760
  %1480 = vmatpush1.msra.mxu0 %v1479
  %1481 = vmatprep.subr.mxu0 0.0
  %v1482 = vand.u32 %v1026, 4294901760
  %1483 = vmatpush1.msra.mxu0 %v1482
  %1484 = vmatprep.subr.mxu0 0.0
  %v1485 = vand.u32 %v1025, 4294901760
  %1486 = vmatpush1.msra.mxu0 %v1485
  %1487 = vmatprep.subr.mxu0 0.0
  %1488 = vmatpush2.msra.mxu0 0.0
  %1489 = vmatprep.subr.mxu0 0.0
  %1490 = vmatpush2.msra.mxu0 0.0
  %1491 = vmatprep.subr.mxu0 0.0
  %1492 = vmatpush2.msra.mxu0 0.0
  %1493 = vmatprep.subr.mxu0 0.0
  %1494 = vmatpush2.msra.mxu0 0.0
  %1495 = vmatprep.subr.mxu0 0.0
  %1496 = vmatpush2.msra.mxu0 0.0
  %1497 = vmatprep.subr.mxu0 0.0
  %1498 = vmatpush2.msra.mxu0 0.0
  %1499 = vmatprep.subr.mxu0 0.0
  %1500 = vmatpush2.msra.mxu0 0.0
  %1501 = vmatprep.subr.mxu0 0.0
  %1502 = vmatpush2.msra.mxu0 0.0
  %1503 = vmatprep.subr.mxu0 0.0
  %1504 = vmatpush2.msra.mxu0 0.0
  %1505 = vmatprep.subr.mxu0 0.0
  %1506 = vmatpush2.msra.mxu0 0.0
  %1507 = vmatprep.subr.mxu0 0.0
  %1508 = vmatpush2.msra.mxu0 0.0
  %1509 = vmatprep.subr.mxu0 0.0
  %1510 = vmatpush2.msra.mxu0 0.0
  %1511 = vmatprep.subr.mxu0 0.0
  %1512 = vmatpush2.msra.mxu0 0.0
  %1513 = vmatprep.subr.mxu0 0.0
  %1514 = vmatpush2.msra.mxu0 0.0
  %1515 = vmatprep.subr.mxu0 0.0
  %1516 = vmatpush2.msra.mxu0 0.0
  %1517 = vmatprep.subr.mxu0 0.0
  %1518 = vmatpush2.msra.mxu0 0.0
  %1519 = vmatprep.mubr.f32.mxu0 0.0
  %v1520 = vand.u32 %v1039, 4294901760
  %1521 = vmatmul.mubr.f32.gmra.mxu0 %v1520
  %v1522 = vpop.f32.mrf.mxu0
  %v1523 = vadd.f32 %v1448, %v1522
  %v1524 = vpop.f32.mrf.mxu0
  %1525 = vdwg.mxu0
  %vm1526 = vcmask 7168
  %1527 = vst.msk [vmem:[%s6] sm:$0xff] %vm1526, %v1523
  // Predicated region
  $region26: #{torch_lstm_forward.1} parent=0 // pred_check
    _
  $region27: #{torch_lstm_forward.1} parent=0 // pred_check_branch
    %1529 = sbr.rel (0) target = $region29
  $region28: #{torch_lstm_forward.1} parent=0 // pred_region
    _
  $region29: #{torch_lstm_forward.1} parent=0 // pred_fallthru
    _
  // Predicated region
  $region30: #{torch_lstm_forward.1} parent=0 // pred_check
    _
  $region31: #{torch_lstm_forward.1} parent=0 // pred_check_branch
    %1531 = sbr.rel (0) target = $region33
  $region32: #{torch_lstm_forward.1} parent=0 // pred_region
    _
  $region33: #{torch_lstm_forward.1} parent=0 // pred_fallthru
    _

</llo_original>
